<compile_context>
chip_gen: v7x
topology: tpu7x:2x2x1
jax: 0.10.0
libtpu: 0.0.40
codegen_flags: <defaults>
</compile_context>

<pallas_src>
import functools

import jax
import jax.numpy as jnp
import numpy as np
from jax.experimental import pallas as pl
from jax.experimental.pallas import tpu as pltpu

_EPS2 = 1e-24  # F.normalize(p=2, eps=1e-12) clamps the norm; we clamp norm^2.


def _ltr_angle_kernel(t_ref, s_ref, m_ref, out_ref, *, loss_type, L):
    """One grid step over a (sub_rows, C) token slab.

    t_ref  : (L, D,  sub_rows, C)  teacher embeddings (native dtype)
    s_ref  : (L, SD, sub_rows, C)  student embeddings (native dtype)
    m_ref  : (sub_rows, C) f32     per-token attention mask
    out_ref: (sub_rows, C) f32     lane-dense per-token partial loss
    """
    m = m_ref[...]  # (sub_rows, C)

    def grams(ref):
        # Per-token Gram G[p,q] = <x_p, x_q> (upper triangle incl. diagonal)
        # and the clamped inverse layer-difference norms
        # 1 / max(|x_q - x_p|, 1e-12).  D is the leading axis, so each dot is
        # D fully-dense VALU multiply-adds on (sub_rows, C) slabs -- no XLU
        # reduce anywhere.  rsqrt runs on the EUP slot.
        xs = [ref[l].astype(jnp.float32) for l in range(L)]   # (D, sub_rows, C)
        G = {}
        for p in range(L):
            for q in range(p, L):
                G[(p, q)] = jnp.sum(xs[p] * xs[q], axis=0)     # (sub_rows, C)
        inv = {}
        for p in range(L):
            for q in range(p + 1, L):
                nsq = G[(q, q)] - 2.0 * G[(p, q)] + G[(p, p)]  # |x_q - x_p|^2
                inv[(p, q)] = jax.lax.rsqrt(jnp.maximum(nsq, _EPS2))
        return G, inv

    def gval(G, i, j):
        return G[(i, j)] if i <= j else G[(j, i)]

    def angle(G, inv, a, j, k):
        # normalized <x_j - x_a, x_k - x_a>, expanded through the Gram so the
        # (dim, tokens) difference tensors are never materialized.
        num = gval(G, j, k) - gval(G, j, a) - gval(G, a, k) + gval(G, a, a)
        return num * inv[(min(a, j), max(a, j))] * inv[(min(a, k), max(a, k))]

    tG, t_inv = grams(t_ref)   # teacher (torch computes this under no_grad)
    sG, s_inv = grams(s_ref)   # student

    acc = jnp.zeros_like(m)    # (sub_rows, C) running per-token loss
    for a in range(L):
        others = [x for x in range(L) if x != a]
        for ji in range(len(others)):
            for ki in range(ji + 1, len(others)):
                j, k = others[ji], others[ki]
                # (s*m - t*m) == (s - t)*m : exact for arbitrary masks, O(1)
                # per token on dense slabs.
                d = (angle(sG, s_inv, a, j, k) - angle(tG, t_inv, a, j, k)) * m
                if loss_type == "l1loss":
                    acc = acc + jnp.abs(d)
                elif loss_type == "l2loss":
                    acc = acc + d * d
                elif loss_type == "smoothl1":
                    ad = jnp.abs(d)
                    acc = acc + jnp.where(ad < 1.0, 0.5 * d * d, ad - 0.5)
                else:
                    raise ValueError(f"unknown loss {loss_type!r}")

    # (j,k) and (k,j) give identical terms -> x2.  Entries with j==a or k==a
    # are exactly 0 for both tensors; the j==k diagonal is ~1 for both
    # (difference ~1e-7, far below tolerance) -- all skipped above.
    # Store the full lane-dense slab; the wrapper finishes the reduction.
    out_ref[...] = 2.0 * acc


def _pick_tiling(N, L, D, SD, t_itemsize, s_itemsize, block_tokens):
    """Choose the token-slab tiling (sub_rows, tokens-per-block, vmem limit)."""
    # Slab sublane height: 8 for 4-byte dtypes, 16 for bf16/fp16, etc., so the
    # packed layout stays native for the narrowest input dtype.
    sub_rows = max(8, 32 // max(1, min(t_itemsize, s_itemsize, 4)))
    gran = sub_rows * 128                      # token-count granularity

    # Rough live-VMEM bytes per token: double-buffered input blocks + f32
    # working copies of the layers + one product temporary + the small
    # per-token Gram / inv / acc / mask / out slabs.
    n_grams = L * (L + 1) // 2
    n_pairs = L * (L - 1) // 2
    per_tok = (2 * L * (D * t_itemsize + SD * s_itemsize)
               + 4 * L * (D + SD)
               + 4 * max(D, SD)
               + 4 * (2 * n_grams + 2 * n_pairs + 4))

    # Generation-aware VMEM ceiling: v7x has 64 MiB per TensorCore,
    # v5e/v6e have 128 MiB physical.
    try:
        kind = jax.devices()[0].device_kind
    except Exception:
        kind = ""
    phys_vmem = (64 if "7" in kind else 128) * 1024 * 1024
    vmem_limit = min(48 * 1024 * 1024, phys_vmem - 16 * 1024 * 1024)
    budget = vmem_limit // 2                   # spill / bookkeeping headroom

    tn = min(block_tokens, max(gran, (budget // per_tok) // gran * gran))
    tn = min(tn, pl.cdiv(N, gran) * gran)      # never pad more than one granule
    if N > 2 * gran:                           # keep >= 2 blocks so both v7x
        tn = min(tn, pl.cdiv(pl.cdiv(N, 2), gran) * gran)  # TensorCores get work
    tn = max(gran, (tn // gran) * gran)
    return sub_rows, tn, vmem_limit


def ltr_angle(t_embed, s_embed, attention_mask, loss="l2loss", block_tokens=4096):
    """Pallas implementation of LTR_Angle.forward.  Returns a scalar float32."""
    if loss not in ("l1loss", "l2loss", "smoothl1"):
        raise ValueError(f"unknown loss {loss!r}")

    bsz, L, T, D = t_embed.shape
    SD = s_embed.shape[-1]
    N = bsz * T

    t_item = t_embed.dtype.itemsize
    s_item = s_embed.dtype.itemsize
    sub_rows, tn, vmem_limit = _pick_tiling(N, L, D, SD, t_item, s_item, block_tokens)
    C = tn // sub_rows
    n_blocks = pl.cdiv(N, tn)
    n_padded = n_blocks * tn
    n_pad = n_padded - N
    R = n_blocks * sub_rows

    # Re-layout to the token-slab layout (L, dim, R, C): tokens fill the two
    # minor (sublane, lane) axes, dim is an outer axis.  Embeddings stay in
    # their native dtype (bf16 is DMA'd as-is and upcast inside the kernel).
    # The transpose + pad + reshape fuse into one XLA copy per tensor.
    # TODO(synk): fold this re-layout into the BlockSpec / an in-kernel tile
    # transpose to remove the extra HBM round trip.
    t_tok = jnp.transpose(t_embed, (1, 3, 0, 2)).reshape(L, D, N)
    s_tok = jnp.transpose(s_embed, (1, 3, 0, 2)).reshape(L, SD, N)
    m_tok = attention_mask.astype(jnp.float32).reshape(N)
    if n_pad:
        # Padded tokens have mask 0 and zero embeddings -> contribute exactly 0.
        t_tok = jnp.pad(t_tok, ((0, 0), (0, 0), (0, n_pad)))
        s_tok = jnp.pad(s_tok, ((0, 0), (0, 0), (0, n_pad)))
        m_tok = jnp.pad(m_tok, ((0, n_pad),))
    t_tok = t_tok.reshape(L, D, R, C)
    s_tok = s_tok.reshape(L, SD, R, C)
    m_tok = m_tok.reshape(R, C)

    kernel = functools.partial(_ltr_angle_kernel, loss_type=loss, L=L)

    partials = pl.pallas_call(
        kernel,
        out_shape=jax.ShapeDtypeStruct((R, C), jnp.float32),
        grid_spec=pltpu.PrefetchScalarGridSpec(
            num_scalar_prefetch=0,
            grid=(n_blocks,),
            in_specs=[
                pl.BlockSpec((L, D, sub_rows, C), lambda i: (0, 0, i, 0)),
                pl.BlockSpec((L, SD, sub_rows, C), lambda i: (0, 0, i, 0)),
                pl.BlockSpec((sub_rows, C), lambda i: (i, 0)),
            ],
            out_specs=pl.BlockSpec((sub_rows, C), lambda i: (i, 0)),
        ),
        compiler_params=pltpu.CompilerParams(
            dimension_semantics=("parallel",),   # independent partials -> megacore/v7x safe
            vmem_limit_bytes=vmem_limit),
    )(t_tok, s_tok, m_tok)

    loss_sum = jnp.sum(partials)
    # torch's mask.sum() == sum(attention_mask) * L^3 (mask repeated L, L, L).
    # (An all-zero mask yields inf/NaN, exactly like the torch module.)
    mask_total = jnp.sum(attention_mask.astype(jnp.float32)) * (L ** 3)
    return loss_sum / mask_total


def ltr_angle_ref(t_embed, s_embed, attention_mask, loss):
    """Pure-JAX reference mirroring the PyTorch forward."""
    bsz, L, T, D = t_embed.shape
    SD = s_embed.shape[-1]
    N = bsz * T
    t = jnp.transpose(t_embed, (0, 2, 1, 3)).reshape(N, L, D).astype(jnp.float32)
    s = jnp.transpose(s_embed, (0, 2, 1, 3)).reshape(N, L, SD).astype(jnp.float32)
    m = attention_mask.reshape(N).astype(jnp.float32)

    def ang(x):
        sub = x[:, None, :, :] - x[:, :, None, :]
        nrm = jnp.sqrt(jnp.sum(sub * sub, axis=-1, keepdims=True))
        sub = sub / jnp.maximum(nrm, 1e-12)
        return jnp.einsum('nijd,nikd->nijk', sub, sub)

    ta = ang(t) * m[:, None, None, None]
    sa = ang(s) * m[:, None, None, None]
    d = sa - ta
    if loss == 'l1loss':
        v = jnp.sum(jnp.abs(d))
    elif loss == 'l2loss':
        v = jnp.sum(d * d)
    else:
        ad = jnp.abs(d)
        v = jnp.sum(jnp.where(ad < 1.0, 0.5 * d * d, ad - 0.5))
    return v / (jnp.sum(m) * L ** 3)


if __name__ == "__main__":
    key = jax.random.PRNGKey(0)
    k1, k2 = jax.random.split(key)

    bsz, L, T, D, SD = 2, 4, 8, 32, 16          # (batch, layers, max_len, t_dim, s_dim)
    t_embed = jax.random.normal(k1, (bsz, L, T, D), dtype=jnp.float32)
    s_embed = jax.random.normal(k2, (bsz, L, T, SD), dtype=jnp.float32)
    # Deterministic 0/1 attention mask: 6 valid tokens in seq 0, 5 in seq 1.
    attention_mask = (jnp.arange(T)[None, :] < jnp.array([6, 5])[:, None]).astype(jnp.float32)

    for loss_name in ("l1loss", "l2loss", "smoothl1"):
        out = jax.block_until_ready(ltr_angle(t_embed, s_embed, attention_mask, loss_name))
        ref = ltr_angle_ref(t_embed, s_embed, attention_mask, loss_name)
        np.testing.assert_allclose(np.asarray(out), np.asarray(ref), rtol=1e-3, atol=1e-5)

    print("KERNEL_OK")
</pallas_src>

<mosaic_0001>
module attributes {stable_mosaic.version = 11 : i64} {
  func.func @_ltr_angle_kernel(%arg0: i32, %arg1: memref<4x32x8x128xf32, #tpu.memory_space<vmem>>, %arg2: memref<4x16x8x128xf32, #tpu.memory_space<vmem>>, %arg3: memref<8x128xf32, #tpu.memory_space<vmem>>, %arg4: memref<8x128xf32, #tpu.memory_space<vmem>>) attributes {dimension_semantics = [#tpu.dimension_semantics<parallel>], iteration_bounds = array<i64: 1>, scalar_prefetch = 0 : i64, scratch_operands = 0 : i64, tpu.core_type = #tpu.core_type<tc>, window_params = [{transform_indices = @transform_0, window_bounds = array<i64: 4, 32, 8, 128>}, {transform_indices = @transform_1, window_bounds = array<i64: 4, 16, 8, 128>}, {transform_indices = @transform_2, window_bounds = array<i64: 8, 128>}, {transform_indices = @transform_3, window_bounds = array<i64: 8, 128>}]} {
    %c0 = arith.constant 0 : index
    %c0_0 = arith.constant 0 : index
    %0 = vector.load %arg3[%c0, %c0_0] : memref<8x128xf32, #tpu.memory_space<vmem>>, vector<8x128xf32>
    %c0_1 = arith.constant 0 : index
    %c0_2 = arith.constant 0 : index
    %c0_3 = arith.constant 0 : index
    %c0_4 = arith.constant 0 : index
    %1 = vector.load %arg1[%c0_1, %c0_2, %c0_3, %c0_4] : memref<4x32x8x128xf32, #tpu.memory_space<vmem>>, vector<1x32x8x128xf32>
    %2 = vector.shape_cast %1 : vector<1x32x8x128xf32> to vector<32x8x128xf32>
    %c1 = arith.constant 1 : index
    %c0_5 = arith.constant 0 : index
    %c0_6 = arith.constant 0 : index
    %c0_7 = arith.constant 0 : index
    %3 = vector.load %arg1[%c1, %c0_5, %c0_6, %c0_7] : memref<4x32x8x128xf32, #tpu.memory_space<vmem>>, vector<1x32x8x128xf32>
    %4 = vector.shape_cast %3 : vector<1x32x8x128xf32> to vector<32x8x128xf32>
    %c2 = arith.constant 2 : index
    %c0_8 = arith.constant 0 : index
    %c0_9 = arith.constant 0 : index
    %c0_10 = arith.constant 0 : index
    %5 = vector.load %arg1[%c2, %c0_8, %c0_9, %c0_10] : memref<4x32x8x128xf32, #tpu.memory_space<vmem>>, vector<1x32x8x128xf32>
    %6 = vector.shape_cast %5 : vector<1x32x8x128xf32> to vector<32x8x128xf32>
    %c3 = arith.constant 3 : index
    %c0_11 = arith.constant 0 : index
    %c0_12 = arith.constant 0 : index
    %c0_13 = arith.constant 0 : index
    %7 = vector.load %arg1[%c3, %c0_11, %c0_12, %c0_13] : memref<4x32x8x128xf32, #tpu.memory_space<vmem>>, vector<1x32x8x128xf32>
    %8 = vector.shape_cast %7 : vector<1x32x8x128xf32> to vector<32x8x128xf32>
    %9 = arith.mulf %2, %2 : vector<32x8x128xf32>
    %cst = arith.constant dense<0.000000e+00> : vector<8x128xf32>
    %10 = vector.multi_reduction <add>, %9, %cst [0] : vector<32x8x128xf32> to vector<8x128xf32>
    %11 = arith.mulf %2, %4 : vector<32x8x128xf32>
    %cst_14 = arith.constant dense<0.000000e+00> : vector<8x128xf32>
    %12 = vector.multi_reduction <add>, %11, %cst_14 [0] : vector<32x8x128xf32> to vector<8x128xf32>
    %13 = arith.mulf %2, %6 : vector<32x8x128xf32>
    %cst_15 = arith.constant dense<0.000000e+00> : vector<8x128xf32>
    %14 = vector.multi_reduction <add>, %13, %cst_15 [0] : vector<32x8x128xf32> to vector<8x128xf32>
    %15 = arith.mulf %2, %8 : vector<32x8x128xf32>
    %cst_16 = arith.constant dense<0.000000e+00> : vector<8x128xf32>
    %16 = vector.multi_reduction <add>, %15, %cst_16 [0] : vector<32x8x128xf32> to vector<8x128xf32>
    %17 = arith.mulf %4, %4 : vector<32x8x128xf32>
    %cst_17 = arith.constant dense<0.000000e+00> : vector<8x128xf32>
    %18 = vector.multi_reduction <add>, %17, %cst_17 [0] : vector<32x8x128xf32> to vector<8x128xf32>
    %19 = arith.mulf %4, %6 : vector<32x8x128xf32>
    %cst_18 = arith.constant dense<0.000000e+00> : vector<8x128xf32>
    %20 = vector.multi_reduction <add>, %19, %cst_18 [0] : vector<32x8x128xf32> to vector<8x128xf32>
    %21 = arith.mulf %4, %8 : vector<32x8x128xf32>
    %cst_19 = arith.constant dense<0.000000e+00> : vector<8x128xf32>
    %22 = vector.multi_reduction <add>, %21, %cst_19 [0] : vector<32x8x128xf32> to vector<8x128xf32>
    %23 = arith.mulf %6, %6 : vector<32x8x128xf32>
    %cst_20 = arith.constant dense<0.000000e+00> : vector<8x128xf32>
    %24 = vector.multi_reduction <add>, %23, %cst_20 [0] : vector<32x8x128xf32> to vector<8x128xf32>
    %25 = arith.mulf %6, %8 : vector<32x8x128xf32>
    %cst_21 = arith.constant dense<0.000000e+00> : vector<8x128xf32>
    %26 = vector.multi_reduction <add>, %25, %cst_21 [0] : vector<32x8x128xf32> to vector<8x128xf32>
    %27 = arith.mulf %8, %8 : vector<32x8x128xf32>
    %cst_22 = arith.constant dense<0.000000e+00> : vector<8x128xf32>
    %28 = vector.multi_reduction <add>, %27, %cst_22 [0] : vector<32x8x128xf32> to vector<8x128xf32>
    %cst_23 = arith.constant 2.000000e+00 : f32
    %29 = vector.broadcast %cst_23 : f32 to vector<8x128xf32>
    %30 = arith.mulf %29, %12 : vector<8x128xf32>
    %31 = arith.subf %18, %30 : vector<8x128xf32>
    %32 = arith.addf %31, %10 : vector<8x128xf32>
    %cst_24 = arith.constant 1.000000e-24 : f32
    %33 = vector.broadcast %cst_24 : f32 to vector<8x128xf32>
    %34 = arith.maximumf %32, %33 : vector<8x128xf32>
    %35 = math.rsqrt %34 : vector<8x128xf32>
    %cst_25 = arith.constant 2.000000e+00 : f32
    %36 = vector.broadcast %cst_25 : f32 to vector<8x128xf32>
    %37 = arith.mulf %36, %14 : vector<8x128xf32>
    %38 = arith.subf %24, %37 : vector<8x128xf32>
    %39 = arith.addf %38, %10 : vector<8x128xf32>
    %cst_26 = arith.constant 1.000000e-24 : f32
    %40 = vector.broadcast %cst_26 : f32 to vector<8x128xf32>
    %41 = arith.maximumf %39, %40 : vector<8x128xf32>
    %42 = math.rsqrt %41 : vector<8x128xf32>
    %cst_27 = arith.constant 2.000000e+00 : f32
    %43 = vector.broadcast %cst_27 : f32 to vector<8x128xf32>
    %44 = arith.mulf %43, %16 : vector<8x128xf32>
    %45 = arith.subf %28, %44 : vector<8x128xf32>
    %46 = arith.addf %45, %10 : vector<8x128xf32>
    %cst_28 = arith.constant 1.000000e-24 : f32
    %47 = vector.broadcast %cst_28 : f32 to vector<8x128xf32>
    %48 = arith.maximumf %46, %47 : vector<8x128xf32>
    %49 = math.rsqrt %48 : vector<8x128xf32>
    %cst_29 = arith.constant 2.000000e+00 : f32
    %50 = vector.broadcast %cst_29 : f32 to vector<8x128xf32>
    %51 = arith.mulf %50, %20 : vector<8x128xf32>
    %52 = arith.subf %24, %51 : vector<8x128xf32>
    %53 = arith.addf %52, %18 : vector<8x128xf32>
    %cst_30 = arith.constant 1.000000e-24 : f32
    %54 = vector.broadcast %cst_30 : f32 to vector<8x128xf32>
    %55 = arith.maximumf %53, %54 : vector<8x128xf32>
    %56 = math.rsqrt %55 : vector<8x128xf32>
    %cst_31 = arith.constant 2.000000e+00 : f32
    %57 = vector.broadcast %cst_31 : f32 to vector<8x128xf32>
    %58 = arith.mulf %57, %22 : vector<8x128xf32>
    %59 = arith.subf %28, %58 : vector<8x128xf32>
    %60 = arith.addf %59, %18 : vector<8x128xf32>
    %cst_32 = arith.constant 1.000000e-24 : f32
    %61 = vector.broadcast %cst_32 : f32 to vector<8x128xf32>
    %62 = arith.maximumf %60, %61 : vector<8x128xf32>
    %63 = math.rsqrt %62 : vector<8x128xf32>
    %cst_33 = arith.constant 2.000000e+00 : f32
    %64 = vector.broadcast %cst_33 : f32 to vector<8x128xf32>
    %65 = arith.mulf %64, %26 : vector<8x128xf32>
    %66 = arith.subf %28, %65 : vector<8x128xf32>
    %67 = arith.addf %66, %24 : vector<8x128xf32>
    %cst_34 = arith.constant 1.000000e-24 : f32
    %68 = vector.broadcast %cst_34 : f32 to vector<8x128xf32>
    %69 = arith.maximumf %67, %68 : vector<8x128xf32>
    %70 = math.rsqrt %69 : vector<8x128xf32>
    %c0_35 = arith.constant 0 : index
    %c0_36 = arith.constant 0 : index
    %c0_37 = arith.constant 0 : index
    %c0_38 = arith.constant 0 : index
    %71 = vector.load %arg2[%c0_35, %c0_36, %c0_37, %c0_38] : memref<4x16x8x128xf32, #tpu.memory_space<vmem>>, vector<1x16x8x128xf32>
    %72 = vector.shape_cast %71 : vector<1x16x8x128xf32> to vector<16x8x128xf32>
    %c1_39 = arith.constant 1 : index
    %c0_40 = arith.constant 0 : index
    %c0_41 = arith.constant 0 : index
    %c0_42 = arith.constant 0 : index
    %73 = vector.load %arg2[%c1_39, %c0_40, %c0_41, %c0_42] : memref<4x16x8x128xf32, #tpu.memory_space<vmem>>, vector<1x16x8x128xf32>
    %74 = vector.shape_cast %73 : vector<1x16x8x128xf32> to vector<16x8x128xf32>
    %c2_43 = arith.constant 2 : index
    %c0_44 = arith.constant 0 : index
    %c0_45 = arith.constant 0 : index
    %c0_46 = arith.constant 0 : index
    %75 = vector.load %arg2[%c2_43, %c0_44, %c0_45, %c0_46] : memref<4x16x8x128xf32, #tpu.memory_space<vmem>>, vector<1x16x8x128xf32>
    %76 = vector.shape_cast %75 : vector<1x16x8x128xf32> to vector<16x8x128xf32>
    %c3_47 = arith.constant 3 : index
    %c0_48 = arith.constant 0 : index
    %c0_49 = arith.constant 0 : index
    %c0_50 = arith.constant 0 : index
    %77 = vector.load %arg2[%c3_47, %c0_48, %c0_49, %c0_50] : memref<4x16x8x128xf32, #tpu.memory_space<vmem>>, vector<1x16x8x128xf32>
    %78 = vector.shape_cast %77 : vector<1x16x8x128xf32> to vector<16x8x128xf32>
    %79 = arith.mulf %72, %72 : vector<16x8x128xf32>
    %cst_51 = arith.constant dense<0.000000e+00> : vector<8x128xf32>
    %80 = vector.multi_reduction <add>, %79, %cst_51 [0] : vector<16x8x128xf32> to vector<8x128xf32>
    %81 = arith.mulf %72, %74 : vector<16x8x128xf32>
    %cst_52 = arith.constant dense<0.000000e+00> : vector<8x128xf32>
    %82 = vector.multi_reduction <add>, %81, %cst_52 [0] : vector<16x8x128xf32> to vector<8x128xf32>
    %83 = arith.mulf %72, %76 : vector<16x8x128xf32>
    %cst_53 = arith.constant dense<0.000000e+00> : vector<8x128xf32>
    %84 = vector.multi_reduction <add>, %83, %cst_53 [0] : vector<16x8x128xf32> to vector<8x128xf32>
    %85 = arith.mulf %72, %78 : vector<16x8x128xf32>
    %cst_54 = arith.constant dense<0.000000e+00> : vector<8x128xf32>
    %86 = vector.multi_reduction <add>, %85, %cst_54 [0] : vector<16x8x128xf32> to vector<8x128xf32>
    %87 = arith.mulf %74, %74 : vector<16x8x128xf32>
    %cst_55 = arith.constant dense<0.000000e+00> : vector<8x128xf32>
    %88 = vector.multi_reduction <add>, %87, %cst_55 [0] : vector<16x8x128xf32> to vector<8x128xf32>
    %89 = arith.mulf %74, %76 : vector<16x8x128xf32>
    %cst_56 = arith.constant dense<0.000000e+00> : vector<8x128xf32>
    %90 = vector.multi_reduction <add>, %89, %cst_56 [0] : vector<16x8x128xf32> to vector<8x128xf32>
    %91 = arith.mulf %74, %78 : vector<16x8x128xf32>
    %cst_57 = arith.constant dense<0.000000e+00> : vector<8x128xf32>
    %92 = vector.multi_reduction <add>, %91, %cst_57 [0] : vector<16x8x128xf32> to vector<8x128xf32>
    %93 = arith.mulf %76, %76 : vector<16x8x128xf32>
    %cst_58 = arith.constant dense<0.000000e+00> : vector<8x128xf32>
    %94 = vector.multi_reduction <add>, %93, %cst_58 [0] : vector<16x8x128xf32> to vector<8x128xf32>
    %95 = arith.mulf %76, %78 : vector<16x8x128xf32>
    %cst_59 = arith.constant dense<0.000000e+00> : vector<8x128xf32>
    %96 = vector.multi_reduction <add>, %95, %cst_59 [0] : vector<16x8x128xf32> to vector<8x128xf32>
    %97 = arith.mulf %78, %78 : vector<16x8x128xf32>
    %cst_60 = arith.constant dense<0.000000e+00> : vector<8x128xf32>
    %98 = vector.multi_reduction <add>, %97, %cst_60 [0] : vector<16x8x128xf32> to vector<8x128xf32>
    %cst_61 = arith.constant 2.000000e+00 : f32
    %99 = vector.broadcast %cst_61 : f32 to vector<8x128xf32>
    %100 = arith.mulf %99, %82 : vector<8x128xf32>
    %101 = arith.subf %88, %100 : vector<8x128xf32>
    %102 = arith.addf %101, %80 : vector<8x128xf32>
    %cst_62 = arith.constant 1.000000e-24 : f32
    %103 = vector.broadcast %cst_62 : f32 to vector<8x128xf32>
    %104 = arith.maximumf %102, %103 : vector<8x128xf32>
    %105 = math.rsqrt %104 : vector<8x128xf32>
    %cst_63 = arith.constant 2.000000e+00 : f32
    %106 = vector.broadcast %cst_63 : f32 to vector<8x128xf32>
    %107 = arith.mulf %106, %84 : vector<8x128xf32>
    %108 = arith.subf %94, %107 : vector<8x128xf32>
    %109 = arith.addf %108, %80 : vector<8x128xf32>
    %cst_64 = arith.constant 1.000000e-24 : f32
    %110 = vector.broadcast %cst_64 : f32 to vector<8x128xf32>
    %111 = arith.maximumf %109, %110 : vector<8x128xf32>
    %112 = math.rsqrt %111 : vector<8x128xf32>
    %cst_65 = arith.constant 2.000000e+00 : f32
    %113 = vector.broadcast %cst_65 : f32 to vector<8x128xf32>
    %114 = arith.mulf %113, %86 : vector<8x128xf32>
    %115 = arith.subf %98, %114 : vector<8x128xf32>
    %116 = arith.addf %115, %80 : vector<8x128xf32>
    %cst_66 = arith.constant 1.000000e-24 : f32
    %117 = vector.broadcast %cst_66 : f32 to vector<8x128xf32>
    %118 = arith.maximumf %116, %117 : vector<8x128xf32>
    %119 = math.rsqrt %118 : vector<8x128xf32>
    %cst_67 = arith.constant 2.000000e+00 : f32
    %120 = vector.broadcast %cst_67 : f32 to vector<8x128xf32>
    %121 = arith.mulf %120, %90 : vector<8x128xf32>
    %122 = arith.subf %94, %121 : vector<8x128xf32>
    %123 = arith.addf %122, %88 : vector<8x128xf32>
    %cst_68 = arith.constant 1.000000e-24 : f32
    %124 = vector.broadcast %cst_68 : f32 to vector<8x128xf32>
    %125 = arith.maximumf %123, %124 : vector<8x128xf32>
    %126 = math.rsqrt %125 : vector<8x128xf32>
    %cst_69 = arith.constant 2.000000e+00 : f32
    %127 = vector.broadcast %cst_69 : f32 to vector<8x128xf32>
    %128 = arith.mulf %127, %92 : vector<8x128xf32>
    %129 = arith.subf %98, %128 : vector<8x128xf32>
    %130 = arith.addf %129, %88 : vector<8x128xf32>
    %cst_70 = arith.constant 1.000000e-24 : f32
    %131 = vector.broadcast %cst_70 : f32 to vector<8x128xf32>
    %132 = arith.maximumf %130, %131 : vector<8x128xf32>
    %133 = math.rsqrt %132 : vector<8x128xf32>
    %cst_71 = arith.constant 2.000000e+00 : f32
    %134 = vector.broadcast %cst_71 : f32 to vector<8x128xf32>
    %135 = arith.mulf %134, %96 : vector<8x128xf32>
    %136 = arith.subf %98, %135 : vector<8x128xf32>
    %137 = arith.addf %136, %94 : vector<8x128xf32>
    %cst_72 = arith.constant 1.000000e-24 : f32
    %138 = vector.broadcast %cst_72 : f32 to vector<8x128xf32>
    %139 = arith.maximumf %137, %138 : vector<8x128xf32>
    %140 = math.rsqrt %139 : vector<8x128xf32>
    %cst_73 = arith.constant 0.000000e+00 : f32
    %141 = vector.broadcast %cst_73 : f32 to vector<8x128xf32>
    %142 = arith.subf %90, %82 : vector<8x128xf32>
    %143 = arith.subf %142, %84 : vector<8x128xf32>
    %144 = arith.addf %143, %80 : vector<8x128xf32>
    %145 = arith.mulf %144, %105 : vector<8x128xf32>
    %146 = arith.mulf %145, %112 : vector<8x128xf32>
    %147 = arith.subf %20, %12 : vector<8x128xf32>
    %148 = arith.subf %147, %14 : vector<8x128xf32>
    %149 = arith.addf %148, %10 : vector<8x128xf32>
    %150 = arith.mulf %149, %35 : vector<8x128xf32>
    %151 = arith.mulf %150, %42 : vector<8x128xf32>
    %152 = arith.subf %146, %151 : vector<8x128xf32>
    %153 = arith.mulf %152, %0 : vector<8x128xf32>
    %154 = math.absf %153 : vector<8x128xf32>
    %155 = arith.addf %141, %154 : vector<8x128xf32>
    %156 = arith.subf %92, %82 : vector<8x128xf32>
    %157 = arith.subf %156, %86 : vector<8x128xf32>
    %158 = arith.addf %157, %80 : vector<8x128xf32>
    %159 = arith.mulf %158, %105 : vector<8x128xf32>
    %160 = arith.mulf %159, %119 : vector<8x128xf32>
    %161 = arith.subf %22, %12 : vector<8x128xf32>
    %162 = arith.subf %161, %16 : vector<8x128xf32>
    %163 = arith.addf %162, %10 : vector<8x128xf32>
    %164 = arith.mulf %163, %35 : vector<8x128xf32>
    %165 = arith.mulf %164, %49 : vector<8x128xf32>
    %166 = arith.subf %160, %165 : vector<8x128xf32>
    %167 = arith.mulf %166, %0 : vector<8x128xf32>
    %168 = math.absf %167 : vector<8x128xf32>
    %169 = arith.addf %155, %168 : vector<8x128xf32>
    %170 = arith.subf %96, %84 : vector<8x128xf32>
    %171 = arith.subf %170, %86 : vector<8x128xf32>
    %172 = arith.addf %171, %80 : vector<8x128xf32>
    %173 = arith.mulf %172, %112 : vector<8x128xf32>
    %174 = arith.mulf %173, %119 : vector<8x128xf32>
    %175 = arith.subf %26, %14 : vector<8x128xf32>
    %176 = arith.subf %175, %16 : vector<8x128xf32>
    %177 = arith.addf %176, %10 : vector<8x128xf32>
    %178 = arith.mulf %177, %42 : vector<8x128xf32>
    %179 = arith.mulf %178, %49 : vector<8x128xf32>
    %180 = arith.subf %174, %179 : vector<8x128xf32>
    %181 = arith.mulf %180, %0 : vector<8x128xf32>
    %182 = math.absf %181 : vector<8x128xf32>
    %183 = arith.addf %169, %182 : vector<8x128xf32>
    %184 = arith.subf %84, %82 : vector<8x128xf32>
    %185 = arith.subf %184, %90 : vector<8x128xf32>
    %186 = arith.addf %185, %88 : vector<8x128xf32>
    %187 = arith.mulf %186, %105 : vector<8x128xf32>
    %188 = arith.mulf %187, %126 : vector<8x128xf32>
    %189 = arith.subf %14, %12 : vector<8x128xf32>
    %190 = arith.subf %189, %20 : vector<8x128xf32>
    %191 = arith.addf %190, %18 : vector<8x128xf32>
    %192 = arith.mulf %191, %35 : vector<8x128xf32>
    %193 = arith.mulf %192, %56 : vector<8x128xf32>
    %194 = arith.subf %188, %193 : vector<8x128xf32>
    %195 = arith.mulf %194, %0 : vector<8x128xf32>
    %196 = math.absf %195 : vector<8x128xf32>
    %197 = arith.addf %183, %196 : vector<8x128xf32>
    %198 = arith.subf %86, %82 : vector<8x128xf32>
    %199 = arith.subf %198, %92 : vector<8x128xf32>
    %200 = arith.addf %199, %88 : vector<8x128xf32>
    %201 = arith.mulf %200, %105 : vector<8x128xf32>
    %202 = arith.mulf %201, %133 : vector<8x128xf32>
    %203 = arith.subf %16, %12 : vector<8x128xf32>
    %204 = arith.subf %203, %22 : vector<8x128xf32>
    %205 = arith.addf %204, %18 : vector<8x128xf32>
    %206 = arith.mulf %205, %35 : vector<8x128xf32>
    %207 = arith.mulf %206, %63 : vector<8x128xf32>
    %208 = arith.subf %202, %207 : vector<8x128xf32>
    %209 = arith.mulf %208, %0 : vector<8x128xf32>
    %210 = math.absf %209 : vector<8x128xf32>
    %211 = arith.addf %197, %210 : vector<8x128xf32>
    %212 = arith.subf %96, %90 : vector<8x128xf32>
    %213 = arith.subf %212, %92 : vector<8x128xf32>
    %214 = arith.addf %213, %88 : vector<8x128xf32>
    %215 = arith.mulf %214, %126 : vector<8x128xf32>
    %216 = arith.mulf %215, %133 : vector<8x128xf32>
    %217 = arith.subf %26, %20 : vector<8x128xf32>
    %218 = arith.subf %217, %22 : vector<8x128xf32>
    %219 = arith.addf %218, %18 : vector<8x128xf32>
    %220 = arith.mulf %219, %56 : vector<8x128xf32>
    %221 = arith.mulf %220, %63 : vector<8x128xf32>
    %222 = arith.subf %216, %221 : vector<8x128xf32>
    %223 = arith.mulf %222, %0 : vector<8x128xf32>
    %224 = math.absf %223 : vector<8x128xf32>
    %225 = arith.addf %211, %224 : vector<8x128xf32>
    %226 = arith.subf %82, %84 : vector<8x128xf32>
    %227 = arith.subf %226, %90 : vector<8x128xf32>
    %228 = arith.addf %227, %94 : vector<8x128xf32>
    %229 = arith.mulf %228, %112 : vector<8x128xf32>
    %230 = arith.mulf %229, %126 : vector<8x128xf32>
    %231 = arith.subf %12, %14 : vector<8x128xf32>
    %232 = arith.subf %231, %20 : vector<8x128xf32>
    %233 = arith.addf %232, %24 : vector<8x128xf32>
    %234 = arith.mulf %233, %42 : vector<8x128xf32>
    %235 = arith.mulf %234, %56 : vector<8x128xf32>
    %236 = arith.subf %230, %235 : vector<8x128xf32>
    %237 = arith.mulf %236, %0 : vector<8x128xf32>
    %238 = math.absf %237 : vector<8x128xf32>
    %239 = arith.addf %225, %238 : vector<8x128xf32>
    %240 = arith.subf %86, %84 : vector<8x128xf32>
    %241 = arith.subf %240, %96 : vector<8x128xf32>
    %242 = arith.addf %241, %94 : vector<8x128xf32>
    %243 = arith.mulf %242, %112 : vector<8x128xf32>
    %244 = arith.mulf %243, %140 : vector<8x128xf32>
    %245 = arith.subf %16, %14 : vector<8x128xf32>
    %246 = arith.subf %245, %26 : vector<8x128xf32>
    %247 = arith.addf %246, %24 : vector<8x128xf32>
    %248 = arith.mulf %247, %42 : vector<8x128xf32>
    %249 = arith.mulf %248, %70 : vector<8x128xf32>
    %250 = arith.subf %244, %249 : vector<8x128xf32>
    %251 = arith.mulf %250, %0 : vector<8x128xf32>
    %252 = math.absf %251 : vector<8x128xf32>
    %253 = arith.addf %239, %252 : vector<8x128xf32>
    %254 = arith.subf %92, %90 : vector<8x128xf32>
    %255 = arith.subf %254, %96 : vector<8x128xf32>
    %256 = arith.addf %255, %94 : vector<8x128xf32>
    %257 = arith.mulf %256, %126 : vector<8x128xf32>
    %258 = arith.mulf %257, %140 : vector<8x128xf32>
    %259 = arith.subf %22, %20 : vector<8x128xf32>
    %260 = arith.subf %259, %26 : vector<8x128xf32>
    %261 = arith.addf %260, %24 : vector<8x128xf32>
    %262 = arith.mulf %261, %56 : vector<8x128xf32>
    %263 = arith.mulf %262, %70 : vector<8x128xf32>
    %264 = arith.subf %258, %263 : vector<8x128xf32>
    %265 = arith.mulf %264, %0 : vector<8x128xf32>
    %266 = math.absf %265 : vector<8x128xf32>
    %267 = arith.addf %253, %266 : vector<8x128xf32>
    %268 = arith.subf %82, %86 : vector<8x128xf32>
    %269 = arith.subf %268, %92 : vector<8x128xf32>
    %270 = arith.addf %269, %98 : vector<8x128xf32>
    %271 = arith.mulf %270, %119 : vector<8x128xf32>
    %272 = arith.mulf %271, %133 : vector<8x128xf32>
    %273 = arith.subf %12, %16 : vector<8x128xf32>
    %274 = arith.subf %273, %22 : vector<8x128xf32>
    %275 = arith.addf %274, %28 : vector<8x128xf32>
    %276 = arith.mulf %275, %49 : vector<8x128xf32>
    %277 = arith.mulf %276, %63 : vector<8x128xf32>
    %278 = arith.subf %272, %277 : vector<8x128xf32>
    %279 = arith.mulf %278, %0 : vector<8x128xf32>
    %280 = math.absf %279 : vector<8x128xf32>
    %281 = arith.addf %267, %280 : vector<8x128xf32>
    %282 = arith.subf %84, %86 : vector<8x128xf32>
    %283 = arith.subf %282, %96 : vector<8x128xf32>
    %284 = arith.addf %283, %98 : vector<8x128xf32>
    %285 = arith.mulf %284, %119 : vector<8x128xf32>
    %286 = arith.mulf %285, %140 : vector<8x128xf32>
    %287 = arith.subf %14, %16 : vector<8x128xf32>
    %288 = arith.subf %287, %26 : vector<8x128xf32>
    %289 = arith.addf %288, %28 : vector<8x128xf32>
    %290 = arith.mulf %289, %49 : vector<8x128xf32>
    %291 = arith.mulf %290, %70 : vector<8x128xf32>
    %292 = arith.subf %286, %291 : vector<8x128xf32>
    %293 = arith.mulf %292, %0 : vector<8x128xf32>
    %294 = math.absf %293 : vector<8x128xf32>
    %295 = arith.addf %281, %294 : vector<8x128xf32>
    %296 = arith.subf %90, %92 : vector<8x128xf32>
    %297 = arith.subf %296, %96 : vector<8x128xf32>
    %298 = arith.addf %297, %98 : vector<8x128xf32>
    %299 = arith.mulf %298, %133 : vector<8x128xf32>
    %300 = arith.mulf %299, %140 : vector<8x128xf32>
    %301 = arith.subf %20, %22 : vector<8x128xf32>
    %302 = arith.subf %301, %26 : vector<8x128xf32>
    %303 = arith.addf %302, %28 : vector<8x128xf32>
    %304 = arith.mulf %303, %63 : vector<8x128xf32>
    %305 = arith.mulf %304, %70 : vector<8x128xf32>
    %306 = arith.subf %300, %305 : vector<8x128xf32>
    %307 = arith.mulf %306, %0 : vector<8x128xf32>
    %308 = math.absf %307 : vector<8x128xf32>
    %309 = arith.addf %295, %308 : vector<8x128xf32>
    %cst_74 = arith.constant 2.000000e+00 : f32
    %310 = vector.broadcast %cst_74 : f32 to vector<8x128xf32>
    %311 = arith.mulf %310, %309 : vector<8x128xf32>
    %c0_75 = arith.constant 0 : index
    %c0_76 = arith.constant 0 : index
    %312 = vector.load %arg4[%c0_75, %c0_76] : memref<8x128xf32, #tpu.memory_space<vmem>>, vector<8x128xf32>
    tpu.vector_store %arg4[%c0_75, %c0_76], %311 {strides = array<i32>} : memref<8x128xf32, #tpu.memory_space<vmem>>, vector<8x128xf32>,
    return
  }
  func.func @transform_0(%arg0: i32) -> (i32, i32, i32, i32) {
    %c0_i32 = arith.constant 0 : i32
    %c0_i32_0 = arith.constant 0 : i32
    %c0_i32_1 = arith.constant 0 : i32
    %c0_i32_2 = arith.constant 0 : i32
    return %c0_i32, %c0_i32_0, %arg0, %c0_i32_1 : i32, i32, i32, i32
  }
  func.func @transform_1(%arg0: i32) -> (i32, i32, i32, i32) {
    %c0_i32 = arith.constant 0 : i32
    %c0_i32_0 = arith.constant 0 : i32
    %c0_i32_1 = arith.constant 0 : i32
    %c0_i32_2 = arith.constant 0 : i32
    return %c0_i32, %c0_i32_0, %arg0, %c0_i32_1 : i32, i32, i32, i32
  }
  func.func @transform_2(%arg0: i32) -> (i32, i32) {
    %c0_i32 = arith.constant 0 : i32
    %c0_i32_0 = arith.constant 0 : i32
    return %arg0, %c0_i32 : i32, i32
  }
  func.func @transform_3(%arg0: i32) -> (i32, i32) {
    %c0_i32 = arith.constant 0 : i32
    %c0_i32_0 = arith.constant 0 : i32
    return %arg0, %c0_i32 : i32, i32
  }
}

</mosaic_0001>

<llo_original>
// kernel: tpu_custom_call.1
$region0: #{tpu_custom_call.1}
  #allocation0 [shape = 'u32[]', space=smem, size = 0x4, offset = 0x4, fixed_abs, tag = 'smem constant byte address 0x4 - core index']
  #allocation1 [shape = 'u32[144,128]{1,0:T(1,128)}', space=vmem, size = 0x12000, scoped, tag = 'internal scratch']
  %s0 = inlined_call_operand.hbm [shape: f32[4,32,8,128], index: 0, kind: input, shape index: {}]
  %s1 = inlined_call_operand.hbm [shape: f32[4,16,8,128], index: 1, kind: input, shape index: {}]
  %s2 = inlined_call_operand.hbm [shape: f32[8,128], index: 2, kind: input, shape index: {}]
  %s3 = inlined_call_operand.hbm [shape: f32[8,128], index: 3, kind: output, shape index: {}]
  %s4 = sld [smem:[#allocation0]]
  $region34: #{tpu_custom_call.1} parent=0
    _
  %s6 = ssub.s32 1, %s4
  %s7 = scalar_select 0, %s6, %s4
  $region1: #{tpu_custom_call.1} parent=0
    #allocation2 [shape = 'u8[524288]{0}', space=vmem, size = 0x80000, scoped, tag = 'input window, operand 0, single buffered']
    #allocation3 [shape = 's32[1]{0}', space=sflag, size = 0x4, scoped, tag = 'scoped memory for tpu_custom_call.1']
    #allocation4 [shape = 's32[1]{0}', space=sflag, size = 0x4, scoped, tag = 'scoped memory for tpu_custom_call.1']
    #allocation5 [shape = 'u8[262144]{0}', space=vmem, size = 0x40000, scoped, tag = 'input window, operand 1, single buffered']
    #allocation6 [shape = 's32[1]{0}', space=sflag, size = 0x4, scoped, tag = 'scoped memory for tpu_custom_call.1']
    #allocation7 [shape = 'u8[4096]{0}', space=vmem, size = 0x1000, scoped, tag = 'input window, operand 2, single buffered']
    #allocation8 [shape = 'u8[4096]{0}', space=vmem, size = 0x1000, scoped, tag = 'output window, operand 0, single buffered']
    %8 = vsyncpa [#allocation3], 0
    %9 = vsyncpa [#allocation6], 0
    %10 = vsyncpa [#allocation4], 0
    // Predicated region
    $region2: #{tpu_custom_call.1} parent=1 // pred_check
      _
    $region3: #{tpu_custom_call.1} parent=1 // pred_check_branch
      %12 = sbr.rel (0) target = $region5
    $region4: #{tpu_custom_call.1} parent=1 // pred_region
      %s14 = ssub.s32 16384, 16384
      %15 = vsyncadd [#allocation3], %s14
      %s16 = sshll.u32 [#allocation2], 4
      %s17 = int_to_ptr.vmem [resolvable:$true] %s16
      %22 = dma.hbm_to_vmem [thread:$0]  %s0, 16384, %s17, [#allocation3], 128, 128, 8
    $region5: #{tpu_custom_call.1} parent=1 // pred_fallthru
      _
    // Predicated region
    $region6: #{tpu_custom_call.1} parent=1 // pred_check
      _
    $region7: #{tpu_custom_call.1} parent=1 // pred_check_branch
      %24 = sbr.rel (0) target = $region9
    $region8: #{tpu_custom_call.1} parent=1 // pred_region
      %s26 = ssub.s32 8192, 8192
      %27 = vsyncadd [#allocation6], %s26
      %s28 = sshll.u32 [#allocation5], 4
      %s29 = int_to_ptr.vmem [resolvable:$true] %s28
      %34 = dma.hbm_to_vmem [thread:$0]  %s1, 8192, %s29, [#allocation6], 128, 128, 8
    $region9: #{tpu_custom_call.1} parent=1 // pred_fallthru
      _
    // Predicated region
    $region10: #{tpu_custom_call.1} parent=1 // pred_check
      _
    $region11: #{tpu_custom_call.1} parent=1 // pred_check_branch
      %36 = sbr.rel (0) target = $region13
    $region12: #{tpu_custom_call.1} parent=1 // pred_region
      %s38 = ssub.s32 128, 128
      %39 = vsyncadd [#allocation6], %s38
      %s41 = sshll.u32 [#allocation7], 4
      %s42 = int_to_ptr.vmem [resolvable:$true] %s41
      %44 = dma.hbm_to_vmem [thread:$0]  %s2, 128, %s42, [#allocation6]
    $region13: #{tpu_custom_call.1} parent=1 // pred_fallthru
      _
    // Predicated region
    $region14: #{tpu_custom_call.1} parent=1 // pred_check
      _
    $region15: #{tpu_custom_call.1} parent=1 // pred_check_branch
      %46 = sbr.rel (0) target = $region17
    $region16: #{tpu_custom_call.1} parent=1 // pred_region
      %47 = dma.done [#allocation3], 16384
    $region17: #{tpu_custom_call.1} parent=1 // pred_fallthru
      _
    // Predicated region
    $region18: #{tpu_custom_call.1} parent=1 // pred_check
      _
    $region19: #{tpu_custom_call.1} parent=1 // pred_check_branch
      %49 = sbr.rel (0) target = $region21
    $region20: #{tpu_custom_call.1} parent=1 // pred_region
      %50 = dma.done [#allocation6], 8192
    $region21: #{tpu_custom_call.1} parent=1 // pred_fallthru
      _
    // Predicated region
    $region22: #{tpu_custom_call.1} parent=1 // pred_check
      _
    $region23: #{tpu_custom_call.1} parent=1 // pred_check_branch
      %52 = sbr.rel (0) target = $region25
    $region24: #{tpu_custom_call.1} parent=1 // pred_region
      %53 = dma.done [#allocation6], 128
    $region25: #{tpu_custom_call.1} parent=1 // pred_fallthru
      _
    %v54 = vld [vmem:[#allocation7] sm:$0xff]
    %v55 = vld [vmem:[#allocation2] sm:$0xff]
    %v56 = vld [vmem:[#allocation2 + $0x8] sm:$0xff]
    %v57 = vld [vmem:[#allocation2 + $0x10] sm:$0xff]
    %v58 = vld [vmem:[#allocation2 + $0x18] sm:$0xff]
    %v59 = vld [vmem:[#allocation2 + $0x20] sm:$0xff]
    %v60 = vld [vmem:[#allocation2 + $0x28] sm:$0xff]
    %v61 = vld [vmem:[#allocation2 + $0x30] sm:$0xff]
    %v62 = vld [vmem:[#allocation2 + $0x38] sm:$0xff]
    %v63 = vld [vmem:[#allocation2 + $0x40] sm:$0xff]
    %v64 = vld [vmem:[#allocation2 + $0x48] sm:$0xff]
    %v65 = vld [vmem:[#allocation2 + $0x50] sm:$0xff]
    %v66 = vld [vmem:[#allocation2 + $0x58] sm:$0xff]
    %v67 = vld [vmem:[#allocation2 + $0x60] sm:$0xff]
    %v68 = vld [vmem:[#allocation2 + $0x68] sm:$0xff]
    %v69 = vld [vmem:[#allocation2 + $0x70] sm:$0xff]
    %v70 = vld [vmem:[#allocation2 + $0x78] sm:$0xff]
    %v71 = vld [vmem:[#allocation2 + $0x80] sm:$0xff]
    %v72 = vld [vmem:[#allocation2 + $0x88] sm:$0xff]
    %v73 = vld [vmem:[#allocation2 + $0x90] sm:$0xff]
    %v74 = vld [vmem:[#allocation2 + $0x98] sm:$0xff]
    %v75 = vld [vmem:[#allocation2 + $0xa0] sm:$0xff]
    %v76 = vld [vmem:[#allocation2 + $0xa8] sm:$0xff]
    %v77 = vld [vmem:[#allocation2 + $0xb0] sm:$0xff]
    %v78 = vld [vmem:[#allocation2 + $0xb8] sm:$0xff]
    %v79 = vld [vmem:[#allocation2 + $0xc0] sm:$0xff]
    %v80 = vld [vmem:[#allocation2 + $0xc8] sm:$0xff]
    %v81 = vld [vmem:[#allocation2 + $0xd0] sm:$0xff]
    %v82 = vld [vmem:[#allocation2 + $0xd8] sm:$0xff]
    %v83 = vld [vmem:[#allocation2 + $0xe0] sm:$0xff]
    %v84 = vld [vmem:[#allocation2 + $0xe8] sm:$0xff]
    %v85 = vld [vmem:[#allocation2 + $0xf0] sm:$0xff]
    %v86 = vld [vmem:[#allocation2 + $0xf8] sm:$0xff]
    %s87 = scalar_lea.vmem [#allocation2], 256
    %v88 = vld [vmem:[%s87] sm:$0xff]
    %v89 = vld [vmem:[%s87 + $0x8] sm:$0xff]
    %v90 = vld [vmem:[%s87 + $0x10] sm:$0xff]
    %v91 = vld [vmem:[%s87 + $0x18] sm:$0xff]
    %v92 = vld [vmem:[%s87 + $0x20] sm:$0xff]
    %v93 = vld [vmem:[%s87 + $0x28] sm:$0xff]
    %v94 = vld [vmem:[%s87 + $0x30] sm:$0xff]
    %v95 = vld [vmem:[%s87 + $0x38] sm:$0xff]
    %v96 = vld [vmem:[%s87 + $0x40] sm:$0xff]
    %v97 = vld [vmem:[%s87 + $0x48] sm:$0xff]
    %v98 = vld [vmem:[%s87 + $0x50] sm:$0xff]
    %v99 = vld [vmem:[%s87 + $0x58] sm:$0xff]
    %v100 = vld [vmem:[%s87 + $0x60] sm:$0xff]
    %v101 = vld [vmem:[%s87 + $0x68] sm:$0xff]
    %v102 = vld [vmem:[%s87 + $0x70] sm:$0xff]
    %v103 = vld [vmem:[%s87 + $0x78] sm:$0xff]
    %v104 = vld [vmem:[%s87 + $0x80] sm:$0xff]
    %v105 = vld [vmem:[%s87 + $0x88] sm:$0xff]
    %v106 = vld [vmem:[%s87 + $0x90] sm:$0xff]
    %v107 = vld [vmem:[%s87 + $0x98] sm:$0xff]
    %v108 = vld [vmem:[%s87 + $0xa0] sm:$0xff]
    %v109 = vld [vmem:[%s87 + $0xa8] sm:$0xff]
    %v110 = vld [vmem:[%s87 + $0xb0] sm:$0xff]
    %v111 = vld [vmem:[%s87 + $0xb8] sm:$0xff]
    %v112 = vld [vmem:[%s87 + $0xc0] sm:$0xff]
    %v113 = vld [vmem:[%s87 + $0xc8] sm:$0xff]
    %v114 = vld [vmem:[%s87 + $0xd0] sm:$0xff]
    %v115 = vld [vmem:[%s87 + $0xd8] sm:$0xff]
    %v116 = vld [vmem:[%s87 + $0xe0] sm:$0xff]
    %v117 = vld [vmem:[%s87 + $0xe8] sm:$0xff]
    %v118 = vld [vmem:[%s87 + $0xf0] sm:$0xff]
    %v119 = vld [vmem:[%s87 + $0xf8] sm:$0xff]
    %s120 = scalar_lea.vmem [#allocation2], 512
    %v121 = vld [vmem:[%s120] sm:$0xff]
    %v122 = vld [vmem:[%s120 + $0x8] sm:$0xff]
    %v123 = vld [vmem:[%s120 + $0x10] sm:$0xff]
    %v124 = vld [vmem:[%s120 + $0x18] sm:$0xff]
    %v125 = vld [vmem:[%s120 + $0x20] sm:$0xff]
    %v126 = vld [vmem:[%s120 + $0x28] sm:$0xff]
    %v127 = vld [vmem:[%s120 + $0x30] sm:$0xff]
    %v128 = vld [vmem:[%s120 + $0x38] sm:$0xff]
    %v129 = vld [vmem:[%s120 + $0x40] sm:$0xff]
    %v130 = vld [vmem:[%s120 + $0x48] sm:$0xff]
    %v131 = vld [vmem:[%s120 + $0x50] sm:$0xff]
    %v132 = vld [vmem:[%s120 + $0x58] sm:$0xff]
    %v133 = vld [vmem:[%s120 + $0x60] sm:$0xff]
    %v134 = vld [vmem:[%s120 + $0x68] sm:$0xff]
    %v135 = vld [vmem:[%s120 + $0x70] sm:$0xff]
    %v136 = vld [vmem:[%s120 + $0x78] sm:$0xff]
    %v137 = vld [vmem:[%s120 + $0x80] sm:$0xff]
    %v138 = vld [vmem:[%s120 + $0x88] sm:$0xff]
    %v139 = vld [vmem:[%s120 + $0x90] sm:$0xff]
    %v140 = vld [vmem:[%s120 + $0x98] sm:$0xff]
    %v141 = vld [vmem:[%s120 + $0xa0] sm:$0xff]
    %v142 = vld [vmem:[%s120 + $0xa8] sm:$0xff]
    %v143 = vld [vmem:[%s120 + $0xb0] sm:$0xff]
    %v144 = vld [vmem:[%s120 + $0xb8] sm:$0xff]
    %v145 = vld [vmem:[%s120 + $0xc0] sm:$0xff]
    %v146 = vld [vmem:[%s120 + $0xc8] sm:$0xff]
    %v147 = vld [vmem:[%s120 + $0xd0] sm:$0xff]
    %v148 = vld [vmem:[%s120 + $0xd8] sm:$0xff]
    %v149 = vld [vmem:[%s120 + $0xe0] sm:$0xff]
    %v150 = vld [vmem:[%s120 + $0xe8] sm:$0xff]
    %v151 = vld [vmem:[%s120 + $0xf0] sm:$0xff]
    %v152 = vld [vmem:[%s120 + $0xf8] sm:$0xff]
    %s153 = scalar_lea.vmem [#allocation2], 768
    %v154 = vld [vmem:[%s153] sm:$0xff]
    %v155 = vld [vmem:[%s153 + $0x8] sm:$0xff]
    %v156 = vld [vmem:[%s153 + $0x10] sm:$0xff]
    %v157 = vld [vmem:[%s153 + $0x18] sm:$0xff]
    %v158 = vld [vmem:[%s153 + $0x20] sm:$0xff]
    %v159 = vld [vmem:[%s153 + $0x28] sm:$0xff]
    %v160 = vld [vmem:[%s153 + $0x30] sm:$0xff]
    %v161 = vld [vmem:[%s153 + $0x38] sm:$0xff]
    %v162 = vld [vmem:[%s153 + $0x40] sm:$0xff]
    %v163 = vld [vmem:[%s153 + $0x48] sm:$0xff]
    %v164 = vld [vmem:[%s153 + $0x50] sm:$0xff]
    %v165 = vld [vmem:[%s153 + $0x58] sm:$0xff]
    %v166 = vld [vmem:[%s153 + $0x60] sm:$0xff]
    %v167 = vld [vmem:[%s153 + $0x68] sm:$0xff]
    %v168 = vld [vmem:[%s153 + $0x70] sm:$0xff]
    %v169 = vld [vmem:[%s153 + $0x78] sm:$0xff]
    %v170 = vld [vmem:[%s153 + $0x80] sm:$0xff]
    %v171 = vld [vmem:[%s153 + $0x88] sm:$0xff]
    %v172 = vld [vmem:[%s153 + $0x90] sm:$0xff]
    %v173 = vld [vmem:[%s153 + $0x98] sm:$0xff]
    %v174 = vld [vmem:[%s153 + $0xa0] sm:$0xff]
    %v175 = vld [vmem:[%s153 + $0xa8] sm:$0xff]
    %v176 = vld [vmem:[%s153 + $0xb0] sm:$0xff]
    %v177 = vld [vmem:[%s153 + $0xb8] sm:$0xff]
    %v178 = vld [vmem:[%s153 + $0xc0] sm:$0xff]
    %v179 = vld [vmem:[%s153 + $0xc8] sm:$0xff]
    %v180 = vld [vmem:[%s153 + $0xd0] sm:$0xff]
    %v181 = vld [vmem:[%s153 + $0xd8] sm:$0xff]
    %v182 = vld [vmem:[%s153 + $0xe0] sm:$0xff]
    %v183 = vld [vmem:[%s153 + $0xe8] sm:$0xff]
    %v184 = vld [vmem:[%s153 + $0xf0] sm:$0xff]
    %v185 = vld [vmem:[%s153 + $0xf8] sm:$0xff]
    %v186 = vmul.f32 %v55, %v55
    %v187 = vmul.f32 %v56, %v56
    %v188 = vmul.f32 %v57, %v57
    %v189 = vmul.f32 %v58, %v58
    %v190 = vmul.f32 %v59, %v59
    %v191 = vmul.f32 %v60, %v60
    %v192 = vmul.f32 %v61, %v61
    %v193 = vmul.f32 %v62, %v62
    %v194 = vmul.f32 %v63, %v63
    %v195 = vmul.f32 %v64, %v64
    %v196 = vmul.f32 %v65, %v65
    %v197 = vmul.f32 %v66, %v66
    %v198 = vmul.f32 %v67, %v67
    %v199 = vmul.f32 %v68, %v68
    %v200 = vmul.f32 %v69, %v69
    %v201 = vmul.f32 %v70, %v70
    %v202 = vmul.f32 %v71, %v71
    %v203 = vmul.f32 %v72, %v72
    %v204 = vmul.f32 %v73, %v73
    %v205 = vmul.f32 %v74, %v74
    %v206 = vmul.f32 %v75, %v75
    %v207 = vmul.f32 %v76, %v76
    %v208 = vmul.f32 %v77, %v77
    %v209 = vmul.f32 %v78, %v78
    %v210 = vmul.f32 %v79, %v79
    %v211 = vmul.f32 %v80, %v80
    %v212 = vmul.f32 %v81, %v81
    %v213 = vmul.f32 %v82, %v82
    %v214 = vmul.f32 %v83, %v83
    %v215 = vmul.f32 %v84, %v84
    %v216 = vmul.f32 %v85, %v85
    %v217 = vmul.f32 %v86, %v86
    %v218 = vadd.f32 %v186, %v187
    %v219 = vadd.f32 %v218, %v188
    %v220 = vadd.f32 %v219, %v189
    %v221 = vadd.f32 %v220, %v190
    %v222 = vadd.f32 %v221, %v191
    %v223 = vadd.f32 %v222, %v192
    %v224 = vadd.f32 %v223, %v193
    %v225 = vadd.f32 %v224, %v194
    %v226 = vadd.f32 %v225, %v195
    %v227 = vadd.f32 %v226, %v196
    %v228 = vadd.f32 %v227, %v197
    %v229 = vadd.f32 %v228, %v198
    %v230 = vadd.f32 %v229, %v199
    %v231 = vadd.f32 %v230, %v200
    %v232 = vadd.f32 %v231, %v201
    %v233 = vadd.f32 %v232, %v202
    %v234 = vadd.f32 %v233, %v203
    %v235 = vadd.f32 %v234, %v204
    %v236 = vadd.f32 %v235, %v205
    %v237 = vadd.f32 %v236, %v206
    %v238 = vadd.f32 %v237, %v207
    %v239 = vadd.f32 %v238, %v208
    %v240 = vadd.f32 %v239, %v209
    %v241 = vadd.f32 %v240, %v210
    %v242 = vadd.f32 %v241, %v211
    %v243 = vadd.f32 %v242, %v212
    %v244 = vadd.f32 %v243, %v213
    %v245 = vadd.f32 %v244, %v214
    %v246 = vadd.f32 %v245, %v215
    %v247 = vadd.f32 %v246, %v216
    %v248 = vadd.f32 %v247, %v217
    %v249 = vmul.f32 %v55, %v88
    %v250 = vmul.f32 %v56, %v89
    %v251 = vmul.f32 %v57, %v90
    %v252 = vmul.f32 %v58, %v91
    %v253 = vmul.f32 %v59, %v92
    %v254 = vmul.f32 %v60, %v93
    %v255 = vmul.f32 %v61, %v94
    %v256 = vmul.f32 %v62, %v95
    %v257 = vmul.f32 %v63, %v96
    %v258 = vmul.f32 %v64, %v97
    %v259 = vmul.f32 %v65, %v98
    %v260 = vmul.f32 %v66, %v99
    %v261 = vmul.f32 %v67, %v100
    %v262 = vmul.f32 %v68, %v101
    %v263 = vmul.f32 %v69, %v102
    %v264 = vmul.f32 %v70, %v103
    %v265 = vmul.f32 %v71, %v104
    %v266 = vmul.f32 %v72, %v105
    %v267 = vmul.f32 %v73, %v106
    %v268 = vmul.f32 %v74, %v107
    %v269 = vmul.f32 %v75, %v108
    %v270 = vmul.f32 %v76, %v109
    %v271 = vmul.f32 %v77, %v110
    %v272 = vmul.f32 %v78, %v111
    %v273 = vmul.f32 %v79, %v112
    %v274 = vmul.f32 %v80, %v113
    %v275 = vmul.f32 %v81, %v114
    %v276 = vmul.f32 %v82, %v115
    %v277 = vmul.f32 %v83, %v116
    %v278 = vmul.f32 %v84, %v117
    %v279 = vmul.f32 %v85, %v118
    %v280 = vmul.f32 %v86, %v119
    %v281 = vadd.f32 %v249, %v250
    %v282 = vadd.f32 %v281, %v251
    %v283 = vadd.f32 %v282, %v252
    %v284 = vadd.f32 %v283, %v253
    %v285 = vadd.f32 %v284, %v254
    %v286 = vadd.f32 %v285, %v255
    %v287 = vadd.f32 %v286, %v256
    %v288 = vadd.f32 %v287, %v257
    %v289 = vadd.f32 %v288, %v258
    %v290 = vadd.f32 %v289, %v259
    %v291 = vadd.f32 %v290, %v260
    %v292 = vadd.f32 %v291, %v261
    %v293 = vadd.f32 %v292, %v262
    %v294 = vadd.f32 %v293, %v263
    %v295 = vadd.f32 %v294, %v264
    %v296 = vadd.f32 %v295, %v265
    %v297 = vadd.f32 %v296, %v266
    %v298 = vadd.f32 %v297, %v267
    %v299 = vadd.f32 %v298, %v268
    %v300 = vadd.f32 %v299, %v269
    %v301 = vadd.f32 %v300, %v270
    %v302 = vadd.f32 %v301, %v271
    %v303 = vadd.f32 %v302, %v272
    %v304 = vadd.f32 %v303, %v273
    %v305 = vadd.f32 %v304, %v274
    %v306 = vadd.f32 %v305, %v275
    %v307 = vadd.f32 %v306, %v276
    %v308 = vadd.f32 %v307, %v277
    %v309 = vadd.f32 %v308, %v278
    %v310 = vadd.f32 %v309, %v279
    %v311 = vadd.f32 %v310, %v280
    %v312 = vmul.f32 %v55, %v121
    %v313 = vmul.f32 %v56, %v122
    %v314 = vmul.f32 %v57, %v123
    %v315 = vmul.f32 %v58, %v124
    %v316 = vmul.f32 %v59, %v125
    %v317 = vmul.f32 %v60, %v126
    %v318 = vmul.f32 %v61, %v127
    %v319 = vmul.f32 %v62, %v128
    %v320 = vmul.f32 %v63, %v129
    %v321 = vmul.f32 %v64, %v130
    %v322 = vmul.f32 %v65, %v131
    %v323 = vmul.f32 %v66, %v132
    %v324 = vmul.f32 %v67, %v133
    %v325 = vmul.f32 %v68, %v134
    %v326 = vmul.f32 %v69, %v135
    %v327 = vmul.f32 %v70, %v136
    %v328 = vmul.f32 %v71, %v137
    %v329 = vmul.f32 %v72, %v138
    %v330 = vmul.f32 %v73, %v139
    %v331 = vmul.f32 %v74, %v140
    %v332 = vmul.f32 %v75, %v141
    %v333 = vmul.f32 %v76, %v142
    %v334 = vmul.f32 %v77, %v143
    %v335 = vmul.f32 %v78, %v144
    %v336 = vmul.f32 %v79, %v145
    %v337 = vmul.f32 %v80, %v146
    %v338 = vmul.f32 %v81, %v147
    %v339 = vmul.f32 %v82, %v148
    %v340 = vmul.f32 %v83, %v149
    %v341 = vmul.f32 %v84, %v150
    %v342 = vmul.f32 %v85, %v151
    %v343 = vmul.f32 %v86, %v152
    %v344 = vadd.f32 %v312, %v313
    %v345 = vadd.f32 %v344, %v314
    %v346 = vadd.f32 %v345, %v315
    %v347 = vadd.f32 %v346, %v316
    %v348 = vadd.f32 %v347, %v317
    %v349 = vadd.f32 %v348, %v318
    %v350 = vadd.f32 %v349, %v319
    %v351 = vadd.f32 %v350, %v320
    %v352 = vadd.f32 %v351, %v321
    %v353 = vadd.f32 %v352, %v322
    %v354 = vadd.f32 %v353, %v323
    %v355 = vadd.f32 %v354, %v324
    %v356 = vadd.f32 %v355, %v325
    %v357 = vadd.f32 %v356, %v326
    %v358 = vadd.f32 %v357, %v327
    %v359 = vadd.f32 %v358, %v328
    %v360 = vadd.f32 %v359, %v329
    %v361 = vadd.f32 %v360, %v330
    %v362 = vadd.f32 %v361, %v331
    %v363 = vadd.f32 %v362, %v332
    %v364 = vadd.f32 %v363, %v333
    %v365 = vadd.f32 %v364, %v334
    %v366 = vadd.f32 %v365, %v335
    %v367 = vadd.f32 %v366, %v336
    %v368 = vadd.f32 %v367, %v337
    %v369 = vadd.f32 %v368, %v338
    %v370 = vadd.f32 %v369, %v339
    %v371 = vadd.f32 %v370, %v340
    %v372 = vadd.f32 %v371, %v341
    %v373 = vadd.f32 %v372, %v342
    %v374 = vadd.f32 %v373, %v343
    %v375 = vmul.f32 %v55, %v154
    %v376 = vmul.f32 %v56, %v155
    %v377 = vmul.f32 %v57, %v156
    %v378 = vmul.f32 %v58, %v157
    %v379 = vmul.f32 %v59, %v158
    %v380 = vmul.f32 %v60, %v159
    %v381 = vmul.f32 %v61, %v160
    %v382 = vmul.f32 %v62, %v161
    %v383 = vmul.f32 %v63, %v162
    %v384 = vmul.f32 %v64, %v163
    %v385 = vmul.f32 %v65, %v164
    %v386 = vmul.f32 %v66, %v165
    %v387 = vmul.f32 %v67, %v166
    %v388 = vmul.f32 %v68, %v167
    %v389 = vmul.f32 %v69, %v168
    %v390 = vmul.f32 %v70, %v169
    %v391 = vmul.f32 %v71, %v170
    %v392 = vmul.f32 %v72, %v171
    %v393 = vmul.f32 %v73, %v172
    %v394 = vmul.f32 %v74, %v173
    %v395 = vmul.f32 %v75, %v174
    %v396 = vmul.f32 %v76, %v175
    %v397 = vmul.f32 %v77, %v176
    %v398 = vmul.f32 %v78, %v177
    %v399 = vmul.f32 %v79, %v178
    %v400 = vmul.f32 %v80, %v179
    %v401 = vmul.f32 %v81, %v180
    %v402 = vmul.f32 %v82, %v181
    %v403 = vmul.f32 %v83, %v182
    %v404 = vmul.f32 %v84, %v183
    %v405 = vmul.f32 %v85, %v184
    %v406 = vmul.f32 %v86, %v185
    %v407 = vadd.f32 %v375, %v376
    %v408 = vadd.f32 %v407, %v377
    %v409 = vadd.f32 %v408, %v378
    %v410 = vadd.f32 %v409, %v379
    %v411 = vadd.f32 %v410, %v380
    %v412 = vadd.f32 %v411, %v381
    %v413 = vadd.f32 %v412, %v382
    %v414 = vadd.f32 %v413, %v383
    %v415 = vadd.f32 %v414, %v384
    %v416 = vadd.f32 %v415, %v385
    %v417 = vadd.f32 %v416, %v386
    %v418 = vadd.f32 %v417, %v387
    %v419 = vadd.f32 %v418, %v388
    %v420 = vadd.f32 %v419, %v389
    %v421 = vadd.f32 %v420, %v390
    %v422 = vadd.f32 %v421, %v391
    %v423 = vadd.f32 %v422, %v392
    %v424 = vadd.f32 %v423, %v393
    %v425 = vadd.f32 %v424, %v394
    %v426 = vadd.f32 %v425, %v395
    %v427 = vadd.f32 %v426, %v396
    %v428 = vadd.f32 %v427, %v397
    %v429 = vadd.f32 %v428, %v398
    %v430 = vadd.f32 %v429, %v399
    %v431 = vadd.f32 %v430, %v400
    %v432 = vadd.f32 %v431, %v401
    %v433 = vadd.f32 %v432, %v402
    %v434 = vadd.f32 %v433, %v403
    %v435 = vadd.f32 %v434, %v404
    %v436 = vadd.f32 %v435, %v405
    %v437 = vadd.f32 %v436, %v406
    %v438 = vmul.f32 %v88, %v88
    %v439 = vmul.f32 %v89, %v89
    %v440 = vmul.f32 %v90, %v90
    %v441 = vmul.f32 %v91, %v91
    %v442 = vmul.f32 %v92, %v92
    %v443 = vmul.f32 %v93, %v93
    %v444 = vmul.f32 %v94, %v94
    %v445 = vmul.f32 %v95, %v95
    %v446 = vmul.f32 %v96, %v96
    %v447 = vmul.f32 %v97, %v97
    %v448 = vmul.f32 %v98, %v98
    %v449 = vmul.f32 %v99, %v99
    %v450 = vmul.f32 %v100, %v100
    %v451 = vmul.f32 %v101, %v101
    %v452 = vmul.f32 %v102, %v102
    %v453 = vmul.f32 %v103, %v103
    %v454 = vmul.f32 %v104, %v104
    %v455 = vmul.f32 %v105, %v105
    %v456 = vmul.f32 %v106, %v106
    %v457 = vmul.f32 %v107, %v107
    %v458 = vmul.f32 %v108, %v108
    %v459 = vmul.f32 %v109, %v109
    %v460 = vmul.f32 %v110, %v110
    %v461 = vmul.f32 %v111, %v111
    %v462 = vmul.f32 %v112, %v112
    %v463 = vmul.f32 %v113, %v113
    %v464 = vmul.f32 %v114, %v114
    %v465 = vmul.f32 %v115, %v115
    %v466 = vmul.f32 %v116, %v116
    %v467 = vmul.f32 %v117, %v117
    %v468 = vmul.f32 %v118, %v118
    %v469 = vmul.f32 %v119, %v119
    %v470 = vadd.f32 %v438, %v439
    %v471 = vadd.f32 %v470, %v440
    %v472 = vadd.f32 %v471, %v441
    %v473 = vadd.f32 %v472, %v442
    %v474 = vadd.f32 %v473, %v443
    %v475 = vadd.f32 %v474, %v444
    %v476 = vadd.f32 %v475, %v445
    %v477 = vadd.f32 %v476, %v446
    %v478 = vadd.f32 %v477, %v447
    %v479 = vadd.f32 %v478, %v448
    %v480 = vadd.f32 %v479, %v449
    %v481 = vadd.f32 %v480, %v450
    %v482 = vadd.f32 %v481, %v451
    %v483 = vadd.f32 %v482, %v452
    %v484 = vadd.f32 %v483, %v453
    %v485 = vadd.f32 %v484, %v454
    %v486 = vadd.f32 %v485, %v455
    %v487 = vadd.f32 %v486, %v456
    %v488 = vadd.f32 %v487, %v457
    %v489 = vadd.f32 %v488, %v458
    %v490 = vadd.f32 %v489, %v459
    %v491 = vadd.f32 %v490, %v460
    %v492 = vadd.f32 %v491, %v461
    %v493 = vadd.f32 %v492, %v462
    %v494 = vadd.f32 %v493, %v463
    %v495 = vadd.f32 %v494, %v464
    %v496 = vadd.f32 %v495, %v465
    %v497 = vadd.f32 %v496, %v466
    %v498 = vadd.f32 %v497, %v467
    %v499 = vadd.f32 %v498, %v468
    %v500 = vadd.f32 %v499, %v469
    %v501 = vmul.f32 %v88, %v121
    %v502 = vmul.f32 %v89, %v122
    %v503 = vmul.f32 %v90, %v123
    %v504 = vmul.f32 %v91, %v124
    %v505 = vmul.f32 %v92, %v125
    %v506 = vmul.f32 %v93, %v126
    %v507 = vmul.f32 %v94, %v127
    %v508 = vmul.f32 %v95, %v128
    %v509 = vmul.f32 %v96, %v129
    %v510 = vmul.f32 %v97, %v130
    %v511 = vmul.f32 %v98, %v131
    %v512 = vmul.f32 %v99, %v132
    %v513 = vmul.f32 %v100, %v133
    %v514 = vmul.f32 %v101, %v134
    %v515 = vmul.f32 %v102, %v135
    %v516 = vmul.f32 %v103, %v136
    %v517 = vmul.f32 %v104, %v137
    %v518 = vmul.f32 %v105, %v138
    %v519 = vmul.f32 %v106, %v139
    %v520 = vmul.f32 %v107, %v140
    %v521 = vmul.f32 %v108, %v141
    %v522 = vmul.f32 %v109, %v142
    %v523 = vmul.f32 %v110, %v143
    %v524 = vmul.f32 %v111, %v144
    %v525 = vmul.f32 %v112, %v145
    %v526 = vmul.f32 %v113, %v146
    %v527 = vmul.f32 %v114, %v147
    %v528 = vmul.f32 %v115, %v148
    %v529 = vmul.f32 %v116, %v149
    %v530 = vmul.f32 %v117, %v150
    %v531 = vmul.f32 %v118, %v151
    %v532 = vmul.f32 %v119, %v152
    %v533 = vadd.f32 %v501, %v502
    %v534 = vadd.f32 %v533, %v503
    %v535 = vadd.f32 %v534, %v504
    %v536 = vadd.f32 %v535, %v505
    %v537 = vadd.f32 %v536, %v506
    %v538 = vadd.f32 %v537, %v507
    %v539 = vadd.f32 %v538, %v508
    %v540 = vadd.f32 %v539, %v509
    %v541 = vadd.f32 %v540, %v510
    %v542 = vadd.f32 %v541, %v511
    %v543 = vadd.f32 %v542, %v512
    %v544 = vadd.f32 %v543, %v513
    %v545 = vadd.f32 %v544, %v514
    %v546 = vadd.f32 %v545, %v515
    %v547 = vadd.f32 %v546, %v516
    %v548 = vadd.f32 %v547, %v517
    %v549 = vadd.f32 %v548, %v518
    %v550 = vadd.f32 %v549, %v519
    %v551 = vadd.f32 %v550, %v520
    %v552 = vadd.f32 %v551, %v521
    %v553 = vadd.f32 %v552, %v522
    %v554 = vadd.f32 %v553, %v523
    %v555 = vadd.f32 %v554, %v524
    %v556 = vadd.f32 %v555, %v525
    %v557 = vadd.f32 %v556, %v526
    %v558 = vadd.f32 %v557, %v527
    %v559 = vadd.f32 %v558, %v528
    %v560 = vadd.f32 %v559, %v529
    %v561 = vadd.f32 %v560, %v530
    %v562 = vadd.f32 %v561, %v531
    %v563 = vadd.f32 %v562, %v532
    %v564 = vmul.f32 %v88, %v154
    %v565 = vmul.f32 %v89, %v155
    %v566 = vmul.f32 %v90, %v156
    %v567 = vmul.f32 %v91, %v157
    %v568 = vmul.f32 %v92, %v158
    %v569 = vmul.f32 %v93, %v159
    %v570 = vmul.f32 %v94, %v160
    %v571 = vmul.f32 %v95, %v161
    %v572 = vmul.f32 %v96, %v162
    %v573 = vmul.f32 %v97, %v163
    %v574 = vmul.f32 %v98, %v164
    %v575 = vmul.f32 %v99, %v165
    %v576 = vmul.f32 %v100, %v166
    %v577 = vmul.f32 %v101, %v167
    %v578 = vmul.f32 %v102, %v168
    %v579 = vmul.f32 %v103, %v169
    %v580 = vmul.f32 %v104, %v170
    %v581 = vmul.f32 %v105, %v171
    %v582 = vmul.f32 %v106, %v172
    %v583 = vmul.f32 %v107, %v173
    %v584 = vmul.f32 %v108, %v174
    %v585 = vmul.f32 %v109, %v175
    %v586 = vmul.f32 %v110, %v176
    %v587 = vmul.f32 %v111, %v177
    %v588 = vmul.f32 %v112, %v178
    %v589 = vmul.f32 %v113, %v179
    %v590 = vmul.f32 %v114, %v180
    %v591 = vmul.f32 %v115, %v181
    %v592 = vmul.f32 %v116, %v182
    %v593 = vmul.f32 %v117, %v183
    %v594 = vmul.f32 %v118, %v184
    %v595 = vmul.f32 %v119, %v185
    %v596 = vadd.f32 %v564, %v565
    %v597 = vadd.f32 %v596, %v566
    %v598 = vadd.f32 %v597, %v567
    %v599 = vadd.f32 %v598, %v568
    %v600 = vadd.f32 %v599, %v569
    %v601 = vadd.f32 %v600, %v570
    %v602 = vadd.f32 %v601, %v571
    %v603 = vadd.f32 %v602, %v572
    %v604 = vadd.f32 %v603, %v573
    %v605 = vadd.f32 %v604, %v574
    %v606 = vadd.f32 %v605, %v575
    %v607 = vadd.f32 %v606, %v576
    %v608 = vadd.f32 %v607, %v577
    %v609 = vadd.f32 %v608, %v578
    %v610 = vadd.f32 %v609, %v579
    %v611 = vadd.f32 %v610, %v580
    %v612 = vadd.f32 %v611, %v581
    %v613 = vadd.f32 %v612, %v582
    %v614 = vadd.f32 %v613, %v583
    %v615 = vadd.f32 %v614, %v584
    %v616 = vadd.f32 %v615, %v585
    %v617 = vadd.f32 %v616, %v586
    %v618 = vadd.f32 %v617, %v587
    %v619 = vadd.f32 %v618, %v588
    %v620 = vadd.f32 %v619, %v589
    %v621 = vadd.f32 %v620, %v590
    %v622 = vadd.f32 %v621, %v591
    %v623 = vadd.f32 %v622, %v592
    %v624 = vadd.f32 %v623, %v593
    %v625 = vadd.f32 %v624, %v594
    %v626 = vadd.f32 %v625, %v595
    %v627 = vmul.f32 %v121, %v121
    %v628 = vmul.f32 %v122, %v122
    %v629 = vmul.f32 %v123, %v123
    %v630 = vmul.f32 %v124, %v124
    %v631 = vmul.f32 %v125, %v125
    %v632 = vmul.f32 %v126, %v126
    %v633 = vmul.f32 %v127, %v127
    %v634 = vmul.f32 %v128, %v128
    %v635 = vmul.f32 %v129, %v129
    %v636 = vmul.f32 %v130, %v130
    %v637 = vmul.f32 %v131, %v131
    %v638 = vmul.f32 %v132, %v132
    %v639 = vmul.f32 %v133, %v133
    %v640 = vmul.f32 %v134, %v134
    %v641 = vmul.f32 %v135, %v135
    %v642 = vmul.f32 %v136, %v136
    %v643 = vmul.f32 %v137, %v137
    %v644 = vmul.f32 %v138, %v138
    %v645 = vmul.f32 %v139, %v139
    %v646 = vmul.f32 %v140, %v140
    %v647 = vmul.f32 %v141, %v141
    %v648 = vmul.f32 %v142, %v142
    %v649 = vmul.f32 %v143, %v143
    %v650 = vmul.f32 %v144, %v144
    %v651 = vmul.f32 %v145, %v145
    %v652 = vmul.f32 %v146, %v146
    %v653 = vmul.f32 %v147, %v147
    %v654 = vmul.f32 %v148, %v148
    %v655 = vmul.f32 %v149, %v149
    %v656 = vmul.f32 %v150, %v150
    %v657 = vmul.f32 %v151, %v151
    %v658 = vmul.f32 %v152, %v152
    %v659 = vadd.f32 %v627, %v628
    %v660 = vadd.f32 %v659, %v629
    %v661 = vadd.f32 %v660, %v630
    %v662 = vadd.f32 %v661, %v631
    %v663 = vadd.f32 %v662, %v632
    %v664 = vadd.f32 %v663, %v633
    %v665 = vadd.f32 %v664, %v634
    %v666 = vadd.f32 %v665, %v635
    %v667 = vadd.f32 %v666, %v636
    %v668 = vadd.f32 %v667, %v637
    %v669 = vadd.f32 %v668, %v638
    %v670 = vadd.f32 %v669, %v639
    %v671 = vadd.f32 %v670, %v640
    %v672 = vadd.f32 %v671, %v641
    %v673 = vadd.f32 %v672, %v642
    %v674 = vadd.f32 %v673, %v643
    %v675 = vadd.f32 %v674, %v644
    %v676 = vadd.f32 %v675, %v645
    %v677 = vadd.f32 %v676, %v646
    %v678 = vadd.f32 %v677, %v647
    %v679 = vadd.f32 %v678, %v648
    %v680 = vadd.f32 %v679, %v649
    %v681 = vadd.f32 %v680, %v650
    %v682 = vadd.f32 %v681, %v651
    %v683 = vadd.f32 %v682, %v652
    %v684 = vadd.f32 %v683, %v653
    %v685 = vadd.f32 %v684, %v654
    %v686 = vadd.f32 %v685, %v655
    %v687 = vadd.f32 %v686, %v656
    %v688 = vadd.f32 %v687, %v657
    %v689 = vadd.f32 %v688, %v658
    %v690 = vmul.f32 %v121, %v154
    %v691 = vmul.f32 %v122, %v155
    %v692 = vmul.f32 %v123, %v156
    %v693 = vmul.f32 %v124, %v157
    %v694 = vmul.f32 %v125, %v158
    %v695 = vmul.f32 %v126, %v159
    %v696 = vmul.f32 %v127, %v160
    %v697 = vmul.f32 %v128, %v161
    %v698 = vmul.f32 %v129, %v162
    %v699 = vmul.f32 %v130, %v163
    %v700 = vmul.f32 %v131, %v164
    %v701 = vmul.f32 %v132, %v165
    %v702 = vmul.f32 %v133, %v166
    %v703 = vmul.f32 %v134, %v167
    %v704 = vmul.f32 %v135, %v168
    %v705 = vmul.f32 %v136, %v169
    %v706 = vmul.f32 %v137, %v170
    %v707 = vmul.f32 %v138, %v171
    %v708 = vmul.f32 %v139, %v172
    %v709 = vmul.f32 %v140, %v173
    %v710 = vmul.f32 %v141, %v174
    %v711 = vmul.f32 %v142, %v175
    %v712 = vmul.f32 %v143, %v176
    %v713 = vmul.f32 %v144, %v177
    %v714 = vmul.f32 %v145, %v178
    %v715 = vmul.f32 %v146, %v179
    %v716 = vmul.f32 %v147, %v180
    %v717 = vmul.f32 %v148, %v181
    %v718 = vmul.f32 %v149, %v182
    %v719 = vmul.f32 %v150, %v183
    %v720 = vmul.f32 %v151, %v184
    %v721 = vmul.f32 %v152, %v185
    %v722 = vadd.f32 %v690, %v691
    %v723 = vadd.f32 %v722, %v692
    %v724 = vadd.f32 %v723, %v693
    %v725 = vadd.f32 %v724, %v694
    %v726 = vadd.f32 %v725, %v695
    %v727 = vadd.f32 %v726, %v696
    %v728 = vadd.f32 %v727, %v697
    %v729 = vadd.f32 %v728, %v698
    %v730 = vadd.f32 %v729, %v699
    %v731 = vadd.f32 %v730, %v700
    %v732 = vadd.f32 %v731, %v701
    %v733 = vadd.f32 %v732, %v702
    %v734 = vadd.f32 %v733, %v703
    %v735 = vadd.f32 %v734, %v704
    %v736 = vadd.f32 %v735, %v705
    %v737 = vadd.f32 %v736, %v706
    %v738 = vadd.f32 %v737, %v707
    %v739 = vadd.f32 %v738, %v708
    %v740 = vadd.f32 %v739, %v709
    %v741 = vadd.f32 %v740, %v710
    %v742 = vadd.f32 %v741, %v711
    %v743 = vadd.f32 %v742, %v712
    %v744 = vadd.f32 %v743, %v713
    %v745 = vadd.f32 %v744, %v714
    %v746 = vadd.f32 %v745, %v715
    %v747 = vadd.f32 %v746, %v716
    %v748 = vadd.f32 %v747, %v717
    %v749 = vadd.f32 %v748, %v718
    %v750 = vadd.f32 %v749, %v719
    %v751 = vadd.f32 %v750, %v720
    %v752 = vadd.f32 %v751, %v721
    %v753 = vmul.f32 %v154, %v154
    %v754 = vmul.f32 %v155, %v155
    %v755 = vmul.f32 %v156, %v156
    %v756 = vmul.f32 %v157, %v157
    %v757 = vmul.f32 %v158, %v158
    %v758 = vmul.f32 %v159, %v159
    %v759 = vmul.f32 %v160, %v160
    %v760 = vmul.f32 %v161, %v161
    %v761 = vmul.f32 %v162, %v162
    %v762 = vmul.f32 %v163, %v163
    %v763 = vmul.f32 %v164, %v164
    %v764 = vmul.f32 %v165, %v165
    %v765 = vmul.f32 %v166, %v166
    %v766 = vmul.f32 %v167, %v167
    %v767 = vmul.f32 %v168, %v168
    %v768 = vmul.f32 %v169, %v169
    %v769 = vmul.f32 %v170, %v170
    %v770 = vmul.f32 %v171, %v171
    %v771 = vmul.f32 %v172, %v172
    %v772 = vmul.f32 %v173, %v173
    %v773 = vmul.f32 %v174, %v174
    %v774 = vmul.f32 %v175, %v175
    %v775 = vmul.f32 %v176, %v176
    %v776 = vmul.f32 %v177, %v177
    %v777 = vmul.f32 %v178, %v178
    %v778 = vmul.f32 %v179, %v179
    %v779 = vmul.f32 %v180, %v180
    %v780 = vmul.f32 %v181, %v181
    %v781 = vmul.f32 %v182, %v182
    %v782 = vmul.f32 %v183, %v183
    %v783 = vmul.f32 %v184, %v184
    %v784 = vmul.f32 %v185, %v185
    %v785 = vadd.f32 %v753, %v754
    %v786 = vadd.f32 %v785, %v755
    %v787 = vadd.f32 %v786, %v756
    %v788 = vadd.f32 %v787, %v757
    %v789 = vadd.f32 %v788, %v758
    %v790 = vadd.f32 %v789, %v759
    %v791 = vadd.f32 %v790, %v760
    %v792 = vadd.f32 %v791, %v761
    %v793 = vadd.f32 %v792, %v762
    %v794 = vadd.f32 %v793, %v763
    %v795 = vadd.f32 %v794, %v764
    %v796 = vadd.f32 %v795, %v765
    %v797 = vadd.f32 %v796, %v766
    %v798 = vadd.f32 %v797, %v767
    %v799 = vadd.f32 %v798, %v768
    %v800 = vadd.f32 %v799, %v769
    %v801 = vadd.f32 %v800, %v770
    %v802 = vadd.f32 %v801, %v771
    %v803 = vadd.f32 %v802, %v772
    %v804 = vadd.f32 %v803, %v773
    %v805 = vadd.f32 %v804, %v774
    %v806 = vadd.f32 %v805, %v775
    %v807 = vadd.f32 %v806, %v776
    %v808 = vadd.f32 %v807, %v777
    %v809 = vadd.f32 %v808, %v778
    %v810 = vadd.f32 %v809, %v779
    %v811 = vadd.f32 %v810, %v780
    %v812 = vadd.f32 %v811, %v781
    %v813 = vadd.f32 %v812, %v782
    %v814 = vadd.f32 %v813, %v783
    %v815 = vadd.f32 %v814, %v784
    %v816 = vmul.f32 %v311, 2.0
    %v817 = vsub.f32 %v500, %v816
    %v818 = vadd.f32 %v817, %v248
    %v819 = vmax.f32 %v818, 1e-24
    %v820 = vrsqrt.pop %v819
    %v821 = vmul.f32 %v374, 2.0
    %v822 = vsub.f32 %v689, %v821
    %v823 = vadd.f32 %v822, %v248
    %v824 = vmax.f32 %v823, 1e-24
    %v825 = vrsqrt.pop %v824
    %v826 = vmul.f32 %v437, 2.0
    %v827 = vsub.f32 %v815, %v826
    %v828 = vadd.f32 %v827, %v248
    %v829 = vmax.f32 %v828, 1e-24
    %v830 = vrsqrt.pop %v829
    %v831 = vmul.f32 %v563, 2.0
    %v832 = vsub.f32 %v689, %v831
    %v833 = vadd.f32 %v832, %v500
    %v834 = vmax.f32 %v833, 1e-24
    %v835 = vrsqrt.pop %v834
    %v836 = vmul.f32 %v626, 2.0
    %v837 = vsub.f32 %v815, %v836
    %v838 = vadd.f32 %v837, %v500
    %v839 = vmax.f32 %v838, 1e-24
    %v840 = vrsqrt.pop %v839
    %v841 = vmul.f32 %v752, 2.0
    %v842 = vsub.f32 %v815, %v841
    %v843 = vadd.f32 %v842, %v689
    %v844 = vmax.f32 %v843, 1e-24
    %v845 = vrsqrt.pop %v844
    %v846 = vld [vmem:[#allocation5] sm:$0xff]
    %v847 = vld [vmem:[#allocation5 + $0x8] sm:$0xff]
    %v848 = vld [vmem:[#allocation5 + $0x10] sm:$0xff]
    %v849 = vld [vmem:[#allocation5 + $0x18] sm:$0xff]
    %v850 = vld [vmem:[#allocation5 + $0x20] sm:$0xff]
    %v851 = vld [vmem:[#allocation5 + $0x28] sm:$0xff]
    %v852 = vld [vmem:[#allocation5 + $0x30] sm:$0xff]
    %v853 = vld [vmem:[#allocation5 + $0x38] sm:$0xff]
    %v854 = vld [vmem:[#allocation5 + $0x40] sm:$0xff]
    %v855 = vld [vmem:[#allocation5 + $0x48] sm:$0xff]
    %v856 = vld [vmem:[#allocation5 + $0x50] sm:$0xff]
    %v857 = vld [vmem:[#allocation5 + $0x58] sm:$0xff]
    %v858 = vld [vmem:[#allocation5 + $0x60] sm:$0xff]
    %v859 = vld [vmem:[#allocation5 + $0x68] sm:$0xff]
    %v860 = vld [vmem:[#allocation5 + $0x70] sm:$0xff]
    %v861 = vld [vmem:[#allocation5 + $0x78] sm:$0xff]
    %s862 = scalar_lea.vmem [#allocation5], 128
    %v863 = vld [vmem:[%s862] sm:$0xff]
    %v864 = vld [vmem:[%s862 + $0x8] sm:$0xff]
    %v865 = vld [vmem:[%s862 + $0x10] sm:$0xff]
    %v866 = vld [vmem:[%s862 + $0x18] sm:$0xff]
    %v867 = vld [vmem:[%s862 + $0x20] sm:$0xff]
    %v868 = vld [vmem:[%s862 + $0x28] sm:$0xff]
    %v869 = vld [vmem:[%s862 + $0x30] sm:$0xff]
    %v870 = vld [vmem:[%s862 + $0x38] sm:$0xff]
    %v871 = vld [vmem:[%s862 + $0x40] sm:$0xff]
    %v872 = vld [vmem:[%s862 + $0x48] sm:$0xff]
    %v873 = vld [vmem:[%s862 + $0x50] sm:$0xff]
    %v874 = vld [vmem:[%s862 + $0x58] sm:$0xff]
    %v875 = vld [vmem:[%s862 + $0x60] sm:$0xff]
    %v876 = vld [vmem:[%s862 + $0x68] sm:$0xff]
    %v877 = vld [vmem:[%s862 + $0x70] sm:$0xff]
    %v878 = vld [vmem:[%s862 + $0x78] sm:$0xff]
    %s879 = scalar_lea.vmem [#allocation5], 256
    %v880 = vld [vmem:[%s879] sm:$0xff]
    %v881 = vld [vmem:[%s879 + $0x8] sm:$0xff]
    %v882 = vld [vmem:[%s879 + $0x10] sm:$0xff]
    %v883 = vld [vmem:[%s879 + $0x18] sm:$0xff]
    %v884 = vld [vmem:[%s879 + $0x20] sm:$0xff]
    %v885 = vld [vmem:[%s879 + $0x28] sm:$0xff]
    %v886 = vld [vmem:[%s879 + $0x30] sm:$0xff]
    %v887 = vld [vmem:[%s879 + $0x38] sm:$0xff]
    %v888 = vld [vmem:[%s879 + $0x40] sm:$0xff]
    %v889 = vld [vmem:[%s879 + $0x48] sm:$0xff]
    %v890 = vld [vmem:[%s879 + $0x50] sm:$0xff]
    %v891 = vld [vmem:[%s879 + $0x58] sm:$0xff]
    %v892 = vld [vmem:[%s879 + $0x60] sm:$0xff]
    %v893 = vld [vmem:[%s879 + $0x68] sm:$0xff]
    %v894 = vld [vmem:[%s879 + $0x70] sm:$0xff]
    %v895 = vld [vmem:[%s879 + $0x78] sm:$0xff]
    %s896 = scalar_lea.vmem [#allocation5], 384
    %v897 = vld [vmem:[%s896] sm:$0xff]
    %v898 = vld [vmem:[%s896 + $0x8] sm:$0xff]
    %v899 = vld [vmem:[%s896 + $0x10] sm:$0xff]
    %v900 = vld [vmem:[%s896 + $0x18] sm:$0xff]
    %v901 = vld [vmem:[%s896 + $0x20] sm:$0xff]
    %v902 = vld [vmem:[%s896 + $0x28] sm:$0xff]
    %v903 = vld [vmem:[%s896 + $0x30] sm:$0xff]
    %v904 = vld [vmem:[%s896 + $0x38] sm:$0xff]
    %v905 = vld [vmem:[%s896 + $0x40] sm:$0xff]
    %v906 = vld [vmem:[%s896 + $0x48] sm:$0xff]
    %v907 = vld [vmem:[%s896 + $0x50] sm:$0xff]
    %v908 = vld [vmem:[%s896 + $0x58] sm:$0xff]
    %v909 = vld [vmem:[%s896 + $0x60] sm:$0xff]
    %v910 = vld [vmem:[%s896 + $0x68] sm:$0xff]
    %v911 = vld [vmem:[%s896 + $0x70] sm:$0xff]
    %v912 = vld [vmem:[%s896 + $0x78] sm:$0xff]
    %v913 = vmul.f32 %v846, %v846
    %v914 = vmul.f32 %v847, %v847
    %v915 = vmul.f32 %v848, %v848
    %v916 = vmul.f32 %v849, %v849
    %v917 = vmul.f32 %v850, %v850
    %v918 = vmul.f32 %v851, %v851
    %v919 = vmul.f32 %v852, %v852
    %v920 = vmul.f32 %v853, %v853
    %v921 = vmul.f32 %v854, %v854
    %v922 = vmul.f32 %v855, %v855
    %v923 = vmul.f32 %v856, %v856
    %v924 = vmul.f32 %v857, %v857
    %v925 = vmul.f32 %v858, %v858
    %v926 = vmul.f32 %v859, %v859
    %v927 = vmul.f32 %v860, %v860
    %v928 = vmul.f32 %v861, %v861
    %v929 = vadd.f32 %v913, %v914
    %v930 = vadd.f32 %v929, %v915
    %v931 = vadd.f32 %v930, %v916
    %v932 = vadd.f32 %v931, %v917
    %v933 = vadd.f32 %v932, %v918
    %v934 = vadd.f32 %v933, %v919
    %v935 = vadd.f32 %v934, %v920
    %v936 = vadd.f32 %v935, %v921
    %v937 = vadd.f32 %v936, %v922
    %v938 = vadd.f32 %v937, %v923
    %v939 = vadd.f32 %v938, %v924
    %v940 = vadd.f32 %v939, %v925
    %v941 = vadd.f32 %v940, %v926
    %v942 = vadd.f32 %v941, %v927
    %v943 = vadd.f32 %v942, %v928
    %v944 = vmul.f32 %v846, %v863
    %v945 = vmul.f32 %v847, %v864
    %v946 = vmul.f32 %v848, %v865
    %v947 = vmul.f32 %v849, %v866
    %v948 = vmul.f32 %v850, %v867
    %v949 = vmul.f32 %v851, %v868
    %v950 = vmul.f32 %v852, %v869
    %v951 = vmul.f32 %v853, %v870
    %v952 = vmul.f32 %v854, %v871
    %v953 = vmul.f32 %v855, %v872
    %v954 = vmul.f32 %v856, %v873
    %v955 = vmul.f32 %v857, %v874
    %v956 = vmul.f32 %v858, %v875
    %v957 = vmul.f32 %v859, %v876
    %v958 = vmul.f32 %v860, %v877
    %v959 = vmul.f32 %v861, %v878
    %v960 = vadd.f32 %v944, %v945
    %v961 = vadd.f32 %v960, %v946
    %v962 = vadd.f32 %v961, %v947
    %v963 = vadd.f32 %v962, %v948
    %v964 = vadd.f32 %v963, %v949
    %v965 = vadd.f32 %v964, %v950
    %v966 = vadd.f32 %v965, %v951
    %v967 = vadd.f32 %v966, %v952
    %v968 = vadd.f32 %v967, %v953
    %v969 = vadd.f32 %v968, %v954
    %v970 = vadd.f32 %v969, %v955
    %v971 = vadd.f32 %v970, %v956
    %v972 = vadd.f32 %v971, %v957
    %v973 = vadd.f32 %v972, %v958
    %v974 = vadd.f32 %v973, %v959
    %v975 = vmul.f32 %v846, %v880
    %v976 = vmul.f32 %v847, %v881
    %v977 = vmul.f32 %v848, %v882
    %v978 = vmul.f32 %v849, %v883
    %v979 = vmul.f32 %v850, %v884
    %v980 = vmul.f32 %v851, %v885
    %v981 = vmul.f32 %v852, %v886
    %v982 = vmul.f32 %v853, %v887
    %v983 = vmul.f32 %v854, %v888
    %v984 = vmul.f32 %v855, %v889
    %v985 = vmul.f32 %v856, %v890
    %v986 = vmul.f32 %v857, %v891
    %v987 = vmul.f32 %v858, %v892
    %v988 = vmul.f32 %v859, %v893
    %v989 = vmul.f32 %v860, %v894
    %v990 = vmul.f32 %v861, %v895
    %v991 = vadd.f32 %v975, %v976
    %v992 = vadd.f32 %v991, %v977
    %v993 = vadd.f32 %v992, %v978
    %v994 = vadd.f32 %v993, %v979
    %v995 = vadd.f32 %v994, %v980
    %v996 = vadd.f32 %v995, %v981
    %v997 = vadd.f32 %v996, %v982
    %v998 = vadd.f32 %v997, %v983
    %v999 = vadd.f32 %v998, %v984
    %v1000 = vadd.f32 %v999, %v985
    %v1001 = vadd.f32 %v1000, %v986
    %v1002 = vadd.f32 %v1001, %v987
    %v1003 = vadd.f32 %v1002, %v988
    %v1004 = vadd.f32 %v1003, %v989
    %v1005 = vadd.f32 %v1004, %v990
    %v1006 = vmul.f32 %v846, %v897
    %v1007 = vmul.f32 %v847, %v898
    %v1008 = vmul.f32 %v848, %v899
    %v1009 = vmul.f32 %v849, %v900
    %v1010 = vmul.f32 %v850, %v901
    %v1011 = vmul.f32 %v851, %v902
    %v1012 = vmul.f32 %v852, %v903
    %v1013 = vmul.f32 %v853, %v904
    %v1014 = vmul.f32 %v854, %v905
    %v1015 = vmul.f32 %v855, %v906
    %v1016 = vmul.f32 %v856, %v907
    %v1017 = vmul.f32 %v857, %v908
    %v1018 = vmul.f32 %v858, %v909
    %v1019 = vmul.f32 %v859, %v910
    %v1020 = vmul.f32 %v860, %v911
    %v1021 = vmul.f32 %v861, %v912
    %v1022 = vadd.f32 %v1006, %v1007
    %v1023 = vadd.f32 %v1022, %v1008
    %v1024 = vadd.f32 %v1023, %v1009
    %v1025 = vadd.f32 %v1024, %v1010
    %v1026 = vadd.f32 %v1025, %v1011
    %v1027 = vadd.f32 %v1026, %v1012
    %v1028 = vadd.f32 %v1027, %v1013
    %v1029 = vadd.f32 %v1028, %v1014
    %v1030 = vadd.f32 %v1029, %v1015
    %v1031 = vadd.f32 %v1030, %v1016
    %v1032 = vadd.f32 %v1031, %v1017
    %v1033 = vadd.f32 %v1032, %v1018
    %v1034 = vadd.f32 %v1033, %v1019
    %v1035 = vadd.f32 %v1034, %v1020
    %v1036 = vadd.f32 %v1035, %v1021
    %v1037 = vmul.f32 %v863, %v863
    %v1038 = vmul.f32 %v864, %v864
    %v1039 = vmul.f32 %v865, %v865
    %v1040 = vmul.f32 %v866, %v866
    %v1041 = vmul.f32 %v867, %v867
    %v1042 = vmul.f32 %v868, %v868
    %v1043 = vmul.f32 %v869, %v869
    %v1044 = vmul.f32 %v870, %v870
    %v1045 = vmul.f32 %v871, %v871
    %v1046 = vmul.f32 %v872, %v872
    %v1047 = vmul.f32 %v873, %v873
    %v1048 = vmul.f32 %v874, %v874
    %v1049 = vmul.f32 %v875, %v875
    %v1050 = vmul.f32 %v876, %v876
    %v1051 = vmul.f32 %v877, %v877
    %v1052 = vmul.f32 %v878, %v878
    %v1053 = vadd.f32 %v1037, %v1038
    %v1054 = vadd.f32 %v1053, %v1039
    %v1055 = vadd.f32 %v1054, %v1040
    %v1056 = vadd.f32 %v1055, %v1041
    %v1057 = vadd.f32 %v1056, %v1042
    %v1058 = vadd.f32 %v1057, %v1043
    %v1059 = vadd.f32 %v1058, %v1044
    %v1060 = vadd.f32 %v1059, %v1045
    %v1061 = vadd.f32 %v1060, %v1046
    %v1062 = vadd.f32 %v1061, %v1047
    %v1063 = vadd.f32 %v1062, %v1048
    %v1064 = vadd.f32 %v1063, %v1049
    %v1065 = vadd.f32 %v1064, %v1050
    %v1066 = vadd.f32 %v1065, %v1051
    %v1067 = vadd.f32 %v1066, %v1052
    %v1068 = vmul.f32 %v863, %v880
    %v1069 = vmul.f32 %v864, %v881
    %v1070 = vmul.f32 %v865, %v882
    %v1071 = vmul.f32 %v866, %v883
    %v1072 = vmul.f32 %v867, %v884
    %v1073 = vmul.f32 %v868, %v885
    %v1074 = vmul.f32 %v869, %v886
    %v1075 = vmul.f32 %v870, %v887
    %v1076 = vmul.f32 %v871, %v888
    %v1077 = vmul.f32 %v872, %v889
    %v1078 = vmul.f32 %v873, %v890
    %v1079 = vmul.f32 %v874, %v891
    %v1080 = vmul.f32 %v875, %v892
    %v1081 = vmul.f32 %v876, %v893
    %v1082 = vmul.f32 %v877, %v894
    %v1083 = vmul.f32 %v878, %v895
    %v1084 = vadd.f32 %v1068, %v1069
    %v1085 = vadd.f32 %v1084, %v1070
    %v1086 = vadd.f32 %v1085, %v1071
    %v1087 = vadd.f32 %v1086, %v1072
    %v1088 = vadd.f32 %v1087, %v1073
    %v1089 = vadd.f32 %v1088, %v1074
    %v1090 = vadd.f32 %v1089, %v1075
    %v1091 = vadd.f32 %v1090, %v1076
    %v1092 = vadd.f32 %v1091, %v1077
    %v1093 = vadd.f32 %v1092, %v1078
    %v1094 = vadd.f32 %v1093, %v1079
    %v1095 = vadd.f32 %v1094, %v1080
    %v1096 = vadd.f32 %v1095, %v1081
    %v1097 = vadd.f32 %v1096, %v1082
    %v1098 = vadd.f32 %v1097, %v1083
    %v1099 = vmul.f32 %v863, %v897
    %v1100 = vmul.f32 %v864, %v898
    %v1101 = vmul.f32 %v865, %v899
    %v1102 = vmul.f32 %v866, %v900
    %v1103 = vmul.f32 %v867, %v901
    %v1104 = vmul.f32 %v868, %v902
    %v1105 = vmul.f32 %v869, %v903
    %v1106 = vmul.f32 %v870, %v904
    %v1107 = vmul.f32 %v871, %v905
    %v1108 = vmul.f32 %v872, %v906
    %v1109 = vmul.f32 %v873, %v907
    %v1110 = vmul.f32 %v874, %v908
    %v1111 = vmul.f32 %v875, %v909
    %v1112 = vmul.f32 %v876, %v910
    %v1113 = vmul.f32 %v877, %v911
    %v1114 = vmul.f32 %v878, %v912
    %v1115 = vadd.f32 %v1099, %v1100
    %v1116 = vadd.f32 %v1115, %v1101
    %v1117 = vadd.f32 %v1116, %v1102
    %v1118 = vadd.f32 %v1117, %v1103
    %v1119 = vadd.f32 %v1118, %v1104
    %v1120 = vadd.f32 %v1119, %v1105
    %v1121 = vadd.f32 %v1120, %v1106
    %v1122 = vadd.f32 %v1121, %v1107
    %v1123 = vadd.f32 %v1122, %v1108
    %v1124 = vadd.f32 %v1123, %v1109
    %v1125 = vadd.f32 %v1124, %v1110
    %v1126 = vadd.f32 %v1125, %v1111
    %v1127 = vadd.f32 %v1126, %v1112
    %v1128 = vadd.f32 %v1127, %v1113
    %v1129 = vadd.f32 %v1128, %v1114
    %v1130 = vmul.f32 %v880, %v880
    %v1131 = vmul.f32 %v881, %v881
    %v1132 = vmul.f32 %v882, %v882
    %v1133 = vmul.f32 %v883, %v883
    %v1134 = vmul.f32 %v884, %v884
    %v1135 = vmul.f32 %v885, %v885
    %v1136 = vmul.f32 %v886, %v886
    %v1137 = vmul.f32 %v887, %v887
    %v1138 = vmul.f32 %v888, %v888
    %v1139 = vmul.f32 %v889, %v889
    %v1140 = vmul.f32 %v890, %v890
    %v1141 = vmul.f32 %v891, %v891
    %v1142 = vmul.f32 %v892, %v892
    %v1143 = vmul.f32 %v893, %v893
    %v1144 = vmul.f32 %v894, %v894
    %v1145 = vmul.f32 %v895, %v895
    %v1146 = vadd.f32 %v1130, %v1131
    %v1147 = vadd.f32 %v1146, %v1132
    %v1148 = vadd.f32 %v1147, %v1133
    %v1149 = vadd.f32 %v1148, %v1134
    %v1150 = vadd.f32 %v1149, %v1135
    %v1151 = vadd.f32 %v1150, %v1136
    %v1152 = vadd.f32 %v1151, %v1137
    %v1153 = vadd.f32 %v1152, %v1138
    %v1154 = vadd.f32 %v1153, %v1139
    %v1155 = vadd.f32 %v1154, %v1140
    %v1156 = vadd.f32 %v1155, %v1141
    %v1157 = vadd.f32 %v1156, %v1142
    %v1158 = vadd.f32 %v1157, %v1143
    %v1159 = vadd.f32 %v1158, %v1144
    %v1160 = vadd.f32 %v1159, %v1145
    %v1161 = vmul.f32 %v880, %v897
    %v1162 = vmul.f32 %v881, %v898
    %v1163 = vmul.f32 %v882, %v899
    %v1164 = vmul.f32 %v883, %v900
    %v1165 = vmul.f32 %v884, %v901
    %v1166 = vmul.f32 %v885, %v902
    %v1167 = vmul.f32 %v886, %v903
    %v1168 = vmul.f32 %v887, %v904
    %v1169 = vmul.f32 %v888, %v905
    %v1170 = vmul.f32 %v889, %v906
    %v1171 = vmul.f32 %v890, %v907
    %v1172 = vmul.f32 %v891, %v908
    %v1173 = vmul.f32 %v892, %v909
    %v1174 = vmul.f32 %v893, %v910
    %v1175 = vmul.f32 %v894, %v911
    %v1176 = vmul.f32 %v895, %v912
    %v1177 = vadd.f32 %v1161, %v1162
    %v1178 = vadd.f32 %v1177, %v1163
    %v1179 = vadd.f32 %v1178, %v1164
    %v1180 = vadd.f32 %v1179, %v1165
    %v1181 = vadd.f32 %v1180, %v1166
    %v1182 = vadd.f32 %v1181, %v1167
    %v1183 = vadd.f32 %v1182, %v1168
    %v1184 = vadd.f32 %v1183, %v1169
    %v1185 = vadd.f32 %v1184, %v1170
    %v1186 = vadd.f32 %v1185, %v1171
    %v1187 = vadd.f32 %v1186, %v1172
    %v1188 = vadd.f32 %v1187, %v1173
    %v1189 = vadd.f32 %v1188, %v1174
    %v1190 = vadd.f32 %v1189, %v1175
    %v1191 = vadd.f32 %v1190, %v1176
    %v1192 = vmul.f32 %v897, %v897
    %v1193 = vmul.f32 %v898, %v898
    %v1194 = vmul.f32 %v899, %v899
    %v1195 = vmul.f32 %v900, %v900
    %v1196 = vmul.f32 %v901, %v901
    %v1197 = vmul.f32 %v902, %v902
    %v1198 = vmul.f32 %v903, %v903
    %v1199 = vmul.f32 %v904, %v904
    %v1200 = vmul.f32 %v905, %v905
    %v1201 = vmul.f32 %v906, %v906
    %v1202 = vmul.f32 %v907, %v907
    %v1203 = vmul.f32 %v908, %v908
    %v1204 = vmul.f32 %v909, %v909
    %v1205 = vmul.f32 %v910, %v910
    %v1206 = vmul.f32 %v911, %v911
    %v1207 = vmul.f32 %v912, %v912
    %v1208 = vadd.f32 %v1192, %v1193
    %v1209 = vadd.f32 %v1208, %v1194
    %v1210 = vadd.f32 %v1209, %v1195
    %v1211 = vadd.f32 %v1210, %v1196
    %v1212 = vadd.f32 %v1211, %v1197
    %v1213 = vadd.f32 %v1212, %v1198
    %v1214 = vadd.f32 %v1213, %v1199
    %v1215 = vadd.f32 %v1214, %v1200
    %v1216 = vadd.f32 %v1215, %v1201
    %v1217 = vadd.f32 %v1216, %v1202
    %v1218 = vadd.f32 %v1217, %v1203
    %v1219 = vadd.f32 %v1218, %v1204
    %v1220 = vadd.f32 %v1219, %v1205
    %v1221 = vadd.f32 %v1220, %v1206
    %v1222 = vadd.f32 %v1221, %v1207
    %v1223 = vmul.f32 %v974, 2.0
    %v1224 = vsub.f32 %v1067, %v1223
    %v1225 = vadd.f32 %v1224, %v943
    %v1226 = vmax.f32 %v1225, 1e-24
    %v1227 = vrsqrt.pop %v1226
    %v1228 = vmul.f32 %v1005, 2.0
    %v1229 = vsub.f32 %v1160, %v1228
    %v1230 = vadd.f32 %v1229, %v943
    %v1231 = vmax.f32 %v1230, 1e-24
    %v1232 = vrsqrt.pop %v1231
    %v1233 = vmul.f32 %v1036, 2.0
    %v1234 = vsub.f32 %v1222, %v1233
    %v1235 = vadd.f32 %v1234, %v943
    %v1236 = vmax.f32 %v1235, 1e-24
    %v1237 = vrsqrt.pop %v1236
    %v1238 = vmul.f32 %v1098, 2.0
    %v1239 = vsub.f32 %v1160, %v1238
    %v1240 = vadd.f32 %v1239, %v1067
    %v1241 = vmax.f32 %v1240, 1e-24
    %v1242 = vrsqrt.pop %v1241
    %v1243 = vmul.f32 %v1129, 2.0
    %v1244 = vsub.f32 %v1222, %v1243
    %v1245 = vadd.f32 %v1244, %v1067
    %v1246 = vmax.f32 %v1245, 1e-24
    %v1247 = vrsqrt.pop %v1246
    %v1248 = vmul.f32 %v1191, 2.0
    %v1249 = vsub.f32 %v1222, %v1248
    %v1250 = vadd.f32 %v1249, %v1160
    %v1251 = vmax.f32 %v1250, 1e-24
    %v1252 = vrsqrt.pop %v1251
    %v1253 = vsub.f32 %v1098, %v974
    %v1254 = vsub.f32 %v1253, %v1005
    %v1255 = vadd.f32 %v1254, %v943
    %v1256 = vmul.f32 %v1255, %v1227
    %v1257 = vmul.f32 %v1256, %v1232
    %v1258 = vsub.f32 %v563, %v311
    %v1259 = vsub.f32 %v1258, %v374
    %v1260 = vadd.f32 %v1259, %v248
    %v1261 = vmul.f32 %v1260, %v820
    %v1262 = vmul.f32 %v1261, %v825
    %v1263 = vsub.f32 %v1257, %v1262
    %v1264 = vmul.f32 %v1263, %v54
    %v1265 = vand.u32 2147483647, %v1264
    %v1266 = vadd.f32 %v1265, 0.0
    %v1267 = vsub.f32 %v1129, %v974
    %v1268 = vsub.f32 %v1267, %v1036
    %v1269 = vadd.f32 %v1268, %v943
    %v1270 = vmul.f32 %v1269, %v1227
    %v1271 = vmul.f32 %v1270, %v1237
    %v1272 = vsub.f32 %v626, %v311
    %v1273 = vsub.f32 %v1272, %v437
    %v1274 = vadd.f32 %v1273, %v248
    %v1275 = vmul.f32 %v1274, %v820
    %v1276 = vmul.f32 %v1275, %v830
    %v1277 = vsub.f32 %v1271, %v1276
    %v1278 = vmul.f32 %v1277, %v54
    %v1279 = vand.u32 2147483647, %v1278
    %v1280 = vadd.f32 %v1266, %v1279
    %v1281 = vsub.f32 %v1191, %v1005
    %v1282 = vsub.f32 %v1281, %v1036
    %v1283 = vadd.f32 %v1282, %v943
    %v1284 = vmul.f32 %v1283, %v1232
    %v1285 = vmul.f32 %v1284, %v1237
    %v1286 = vsub.f32 %v752, %v374
    %v1287 = vsub.f32 %v1286, %v437
    %v1288 = vadd.f32 %v1287, %v248
    %v1289 = vmul.f32 %v1288, %v825
    %v1290 = vmul.f32 %v1289, %v830
    %v1291 = vsub.f32 %v1285, %v1290
    %v1292 = vmul.f32 %v1291, %v54
    %v1293 = vand.u32 2147483647, %v1292
    %v1294 = vadd.f32 %v1280, %v1293
    %v1295 = vsub.f32 %v1005, %v974
    %v1296 = vsub.f32 %v1295, %v1098
    %v1297 = vadd.f32 %v1296, %v1067
    %v1298 = vmul.f32 %v1297, %v1227
    %v1299 = vmul.f32 %v1298, %v1242
    %v1300 = vsub.f32 %v374, %v311
    %v1301 = vsub.f32 %v1300, %v563
    %v1302 = vadd.f32 %v1301, %v500
    %v1303 = vmul.f32 %v1302, %v820
    %v1304 = vmul.f32 %v1303, %v835
    %v1305 = vsub.f32 %v1299, %v1304
    %v1306 = vmul.f32 %v1305, %v54
    %v1307 = vand.u32 2147483647, %v1306
    %v1308 = vadd.f32 %v1294, %v1307
    %v1309 = vsub.f32 %v1036, %v974
    %v1310 = vsub.f32 %v1309, %v1129
    %v1311 = vadd.f32 %v1310, %v1067
    %v1312 = vmul.f32 %v1311, %v1227
    %v1313 = vmul.f32 %v1312, %v1247
    %v1314 = vsub.f32 %v437, %v311
    %v1315 = vsub.f32 %v1314, %v626
    %v1316 = vadd.f32 %v1315, %v500
    %v1317 = vmul.f32 %v1316, %v820
    %v1318 = vmul.f32 %v1317, %v840
    %v1319 = vsub.f32 %v1313, %v1318
    %v1320 = vmul.f32 %v1319, %v54
    %v1321 = vand.u32 2147483647, %v1320
    %v1322 = vadd.f32 %v1308, %v1321
    %v1323 = vsub.f32 %v1191, %v1098
    %v1324 = vsub.f32 %v1323, %v1129
    %v1325 = vadd.f32 %v1324, %v1067
    %v1326 = vmul.f32 %v1325, %v1242
    %v1327 = vmul.f32 %v1326, %v1247
    %v1328 = vsub.f32 %v752, %v563
    %v1329 = vsub.f32 %v1328, %v626
    %v1330 = vadd.f32 %v1329, %v500
    %v1331 = vmul.f32 %v1330, %v835
    %v1332 = vmul.f32 %v1331, %v840
    %v1333 = vsub.f32 %v1327, %v1332
    %v1334 = vmul.f32 %v1333, %v54
    %v1335 = vand.u32 2147483647, %v1334
    %v1336 = vadd.f32 %v1322, %v1335
    %v1337 = vsub.f32 %v974, %v1005
    %v1338 = vsub.f32 %v1337, %v1098
    %v1339 = vadd.f32 %v1338, %v1160
    %v1340 = vmul.f32 %v1339, %v1232
    %v1341 = vmul.f32 %v1340, %v1242
    %v1342 = vsub.f32 %v311, %v374
    %v1343 = vsub.f32 %v1342, %v563
    %v1344 = vadd.f32 %v1343, %v689
    %v1345 = vmul.f32 %v1344, %v825
    %v1346 = vmul.f32 %v1345, %v835
    %v1347 = vsub.f32 %v1341, %v1346
    %v1348 = vmul.f32 %v1347, %v54
    %v1349 = vand.u32 2147483647, %v1348
    %v1350 = vadd.f32 %v1336, %v1349
    %v1351 = vsub.f32 %v1036, %v1005
    %v1352 = vsub.f32 %v1351, %v1191
    %v1353 = vadd.f32 %v1352, %v1160
    %v1354 = vmul.f32 %v1353, %v1232
    %v1355 = vmul.f32 %v1354, %v1252
    %v1356 = vsub.f32 %v437, %v374
    %v1357 = vsub.f32 %v1356, %v752
    %v1358 = vadd.f32 %v1357, %v689
    %v1359 = vmul.f32 %v1358, %v825
    %v1360 = vmul.f32 %v1359, %v845
    %v1361 = vsub.f32 %v1355, %v1360
    %v1362 = vmul.f32 %v1361, %v54
    %v1363 = vand.u32 2147483647, %v1362
    %v1364 = vadd.f32 %v1350, %v1363
    %v1365 = vsub.f32 %v1129, %v1098
    %v1366 = vsub.f32 %v1365, %v1191
    %v1367 = vadd.f32 %v1366, %v1160
    %v1368 = vmul.f32 %v1367, %v1242
    %v1369 = vmul.f32 %v1368, %v1252
    %v1370 = vsub.f32 %v626, %v563
    %v1371 = vsub.f32 %v1370, %v752
    %v1372 = vadd.f32 %v1371, %v689
    %v1373 = vmul.f32 %v1372, %v835
    %v1374 = vmul.f32 %v1373, %v845
    %v1375 = vsub.f32 %v1369, %v1374
    %v1376 = vmul.f32 %v1375, %v54
    %v1377 = vand.u32 2147483647, %v1376
    %v1378 = vadd.f32 %v1364, %v1377
    %v1379 = vsub.f32 %v974, %v1036
    %v1380 = vsub.f32 %v1379, %v1129
    %v1381 = vadd.f32 %v1380, %v1222
    %v1382 = vmul.f32 %v1381, %v1237
    %v1383 = vmul.f32 %v1382, %v1247
    %v1384 = vsub.f32 %v311, %v437
    %v1385 = vsub.f32 %v1384, %v626
    %v1386 = vadd.f32 %v1385, %v815
    %v1387 = vmul.f32 %v1386, %v830
    %v1388 = vmul.f32 %v1387, %v840
    %v1389 = vsub.f32 %v1383, %v1388
    %v1390 = vmul.f32 %v1389, %v54
    %v1391 = vand.u32 2147483647, %v1390
    %v1392 = vadd.f32 %v1378, %v1391
    %v1393 = vsub.f32 %v1005, %v1036
    %v1394 = vsub.f32 %v1393, %v1191
    %v1395 = vadd.f32 %v1394, %v1222
    %v1396 = vmul.f32 %v1395, %v1237
    %v1397 = vmul.f32 %v1396, %v1252
    %v1398 = vsub.f32 %v374, %v437
    %v1399 = vsub.f32 %v1398, %v752
    %v1400 = vadd.f32 %v1399, %v815
    %v1401 = vmul.f32 %v1400, %v830
    %v1402 = vmul.f32 %v1401, %v845
    %v1403 = vsub.f32 %v1397, %v1402
    %v1404 = vmul.f32 %v1403, %v54
    %v1405 = vand.u32 2147483647, %v1404
    %v1406 = vadd.f32 %v1392, %v1405
    %v1407 = vsub.f32 %v1098, %v1129
    %v1408 = vsub.f32 %v1407, %v1191
    %v1409 = vadd.f32 %v1408, %v1222
    %v1410 = vmul.f32 %v1409, %v1247
    %v1411 = vmul.f32 %v1410, %v1252
    %v1412 = vsub.f32 %v563, %v626
    %v1413 = vsub.f32 %v1412, %v752
    %v1414 = vadd.f32 %v1413, %v815
    %v1415 = vmul.f32 %v1414, %v840
    %v1416 = vmul.f32 %v1415, %v845
    %v1417 = vsub.f32 %v1411, %v1416
    %v1418 = vmul.f32 %v1417, %v54
    %v1419 = vand.u32 2147483647, %v1418
    %v1420 = vadd.f32 %v1406, %v1419
    %v1421 = vmul.f32 %v1420, 2.0
    %1422 = vst [vmem:[#allocation8] sm:$0xff] %v1421
    // Predicated region
    $region26: #{tpu_custom_call.1} parent=1 // pred_check
      _
    $region27: #{tpu_custom_call.1} parent=1 // pred_check_branch
      %1424 = sbr.rel (0) target = $region29
    $region28: #{tpu_custom_call.1} parent=1 // pred_region
      %s1426 = ssub.s32 128, 128
      %1427 = vsyncadd [#allocation4], %s1426
      %s1429 = sshll.u32 [#allocation8], 4
      %s1430 = int_to_ptr.vmem [resolvable:$true] %s1429
      %1432 = dma.vmem_to_hbm [thread:$0]  %s1430, 128, %s3, [#allocation4]
    $region29: #{tpu_custom_call.1} parent=1 // pred_fallthru
      _
    // Predicated region
    $region30: #{tpu_custom_call.1} parent=1 // pred_check
      _
    $region31: #{tpu_custom_call.1} parent=1 // pred_check_branch
      %1434 = sbr.rel (0) target = $region33
    $region32: #{tpu_custom_call.1} parent=1 // pred_region
      %1435 = dma.done [#allocation4], 128
    $region33: #{tpu_custom_call.1} parent=1 // pred_fallthru
      _
    %1436 = vsyncpa [#allocation3], 1
    %1437 = vsyncpa [#allocation6], 1
    %1438 = vsyncpa [#allocation4], 1

</llo_original>
